<compile_context>
chip_gen: v7x
topology: tpu7x:2x2x1
jax: 0.10.0
libtpu: 0.0.40
codegen_flags: <defaults>
</compile_context>

<pallas_src>
import jax
import jax.numpy as jnp
from jax.experimental import pallas as pl
from jax.experimental.pallas import tpu as pltpu


# ---------------------------------------------------------------------------
# fused kernel
# ---------------------------------------------------------------------------

def _hao_fused_kernel(xc_ref, a1_ref, b2_ref, w1s_ref, w2p_ref, bias_ref,
                      o_ref, c1_ref, lhs2_ref, c2_ref, fcin_ref):
    f32 = jnp.float32
    bf16 = jnp.bfloat16
    ni = o_ref.shape[0]                      # images handled by this grid step

    # ---- conv1: single matmul (K = 256, 140 used); both pool parities in lanes
    #      c1[oh*ni + img, d*128 + j*10 + co] = conv1(x)[img, co, oh, 2*j + d]
    c1_ref[...] = jnp.dot(xc_ref[...], a1_ref[...], preferred_element_type=f32)

    # ---- conv1 bias + 2x2 max-pool + relu, scattered straight into the conv2
    #      im2col layout: lhs2[oh2*ni + img, ki*128 + j*10 + ci]
    b1 = bias_ref[0:1, :]
    for i in range(12):                                       # pooled row index
        r0 = c1_ref[(2 * i) * ni:(2 * i + 1) * ni, :]
        r1 = c1_ref[(2 * i + 1) * ni:(2 * i + 2) * ni, :]
        v = jnp.maximum(r0, r1)                               # pool over rows
        v = jnp.maximum(v[:, :128], v[:, 128:])               # pool over cols
        pooled = jnp.maximum(v + b1, 0.0).astype(bf16)        # bias + relu
        for ki in range(5):
            oh2 = i - ki
            if 0 <= oh2 < 8:
                lhs2_ref[oh2 * ni:(oh2 + 1) * ni,
                         ki * 128:(ki + 1) * 128] = pooled

    # ---- conv2: single matmul (K = 640); both pool parities in lanes
    c2_ref[...] = jnp.dot(lhs2_ref[...], b2_ref[...], preferred_element_type=f32)

    # ---- conv2 bias + 2x2 max-pool + relu into the fc1 input layout:
    #      fcin[img, i2*128 + j2*20 + co2]
    b2 = bias_ref[1:2, :]
    for i2 in range(4):
        r0 = c2_ref[(2 * i2) * ni:(2 * i2 + 1) * ni, :]
        r1 = c2_ref[(2 * i2 + 1) * ni:(2 * i2 + 2) * ni, :]
        v = jnp.maximum(r0, r1)
        v = jnp.maximum(v[:, :128], v[:, 128:])
        fcin_ref[:, i2 * 128:(i2 + 1) * 128] = (
            jnp.maximum(v + b2, 0.0).astype(bf16))

    # ---- fc1 (single K = 512 matmul) + relu
    h = jnp.dot(fcin_ref[...], w1s_ref[...], preferred_element_type=f32)
    h = jnp.maximum(h + bias_ref[2:3, :], 0.0)

    # ---- fc2 + masked softmax over the 10 valid lanes
    logits = jnp.dot(h.astype(bf16), w2p_ref[...],
                     preferred_element_type=f32) + bias_ref[3:4, :]
    lane = jax.lax.broadcasted_iota(jnp.int32, logits.shape, 1)
    valid = lane < 10
    z = jnp.where(valid, logits, -1e30)
    z = z - jnp.max(z, axis=1, keepdims=True)
    e = jnp.where(valid, jnp.exp(z), 0.0)
    denom = jnp.sum(e, axis=1, keepdims=True)
    o_ref[...] = e * pl.reciprocal(denom, approx=True)


# ---------------------------------------------------------------------------
# parameter init (PyTorch-style) and one-time repacking into kernel weights
# ---------------------------------------------------------------------------

def init_params(key):
    ks = jax.random.split(key, 8)

    def u(k, shape, fan_in):
        bound = 1.0 / jnp.sqrt(float(fan_in))
        return jax.random.uniform(k, shape, jnp.float32, -bound, bound)

    return {
        "conv1_w": u(ks[0], (10, 1, 5, 5), 25),
        "conv1_b": u(ks[1], (10,), 25),
        "conv2_w": u(ks[2], (20, 10, 5, 5), 250),
        "conv2_b": u(ks[3], (20,), 250),
        "fc1_w": u(ks[4], (50, 320), 320),
        "fc1_b": u(ks[5], (50,), 320),
        "fc2_w": u(ks[6], (10, 50), 50),
        "fc2_b": u(ks[7], (10,), 50),
    }


def prepare_packed(params):
    """Repack PyTorch-layout weights into lane-dense banded matrices (once)."""
    f32, bf16 = jnp.float32, jnp.bfloat16
    w1 = params["conv1_w"].astype(f32)   # [10, 1, 5, 5]   (co, ci, ki, kj)
    w2 = params["conv2_w"].astype(f32)   # [20, 10, 5, 5]
    fw1 = params["fc1_w"].astype(f32)    # [50, 320]
    fw2 = params["fc2_w"].astype(f32)    # [10, 50]

    # conv1: A1[ki*28 + w', d*128 + j*10 + co] = w1[co, 0, ki, w' - (2j + d)]
    ki_, d_, j_, kj_, co_ = jnp.meshgrid(
        jnp.arange(5), jnp.arange(2), jnp.arange(12), jnp.arange(5),
        jnp.arange(10), indexing="ij")
    rows = (ki_ * 28 + 2 * j_ + d_ + kj_).ravel()
    cols = (d_ * 128 + j_ * 10 + co_).ravel()
    vals = w1[co_, 0, ki_, kj_].ravel()
    A1 = jnp.zeros((256, 256), f32).at[rows, cols].set(vals).astype(bf16)

    # conv2: B2[ki*128 + j*10 + ci, d*128 + j2*20 + co2]
    #            = w2[co2, ci, ki, j - (2*j2 + d)]
    ki_, d_, j2_, kj_, ci_, co_ = jnp.meshgrid(
        jnp.arange(5), jnp.arange(2), jnp.arange(4), jnp.arange(5),
        jnp.arange(10), jnp.arange(20), indexing="ij")
    rows = (ki_ * 128 + (2 * j2_ + d_ + kj_) * 10 + ci_).ravel()
    cols = (d_ * 128 + j2_ * 20 + co_).ravel()
    vals = w2[co_, ci_, ki_, kj_].ravel()
    B2 = jnp.zeros((640, 256), f32).at[rows, cols].set(vals).astype(bf16)

    # fc1: W1s[i2*128 + j2*20 + co2, n] = fc1_w[n, co2*16 + i2*4 + j2]
    fw1r = fw1.reshape(50, 20, 4, 4)                       # [n, co2, i2, j2]
    W1s = jnp.zeros((512, 128), f32)
    for i2 in range(4):
        blk = jnp.transpose(fw1r[:, :, i2, :], (2, 1, 0)).reshape(80, 50)
        W1s = W1s.at[i2 * 128:i2 * 128 + 80, :50].set(blk)
    W1s = W1s.astype(bf16)

    # fc2: W2p[n, m] = fc2_w[m, n]
    W2p = jnp.pad(fw2.T, ((0, 78), (0, 118))).astype(bf16)  # [128, 128]

    biases = jnp.stack([
        jnp.pad(jnp.tile(params["conv1_b"].astype(f32), 12), (0, 8)),
        jnp.pad(jnp.tile(params["conv2_b"].astype(f32), 4), (0, 48)),
        jnp.pad(params["fc1_b"].astype(f32), (0, 78)),
        jnp.pad(params["fc2_b"].astype(f32), (0, 118)),
    ])                                                     # [4, 128] f32

    return {"A1": A1, "B2": B2, "W1s": W1s, "W2p": W2p, "bias": biases}


# ---------------------------------------------------------------------------
# forward wrapper
# ---------------------------------------------------------------------------

def _pick_image_block(batch):
    """Images per grid step: big for MXU/overhead, >=2 steps for v7x megacore."""
    nb8 = ((batch + 7) // 8) * 8
    if nb8 <= 32:
        return nb8
    if nb8 <= 128:
        return ((nb8 // 2 + 7) // 8) * 8      # two grid steps -> both TCs busy
    return 64


@jax.jit
def hao_forward(packed, x):
    # x: [B, 1, 28, 28] float32 (NCHW, like the PyTorch module)
    B = x.shape[0]
    ni = _pick_image_block(B)
    Bp = ((B + ni - 1) // ni) * ni
    nb = Bp // ni

    xs = x.reshape(B, 28, 28).astype(jnp.float32)
    if Bp != B:
        xs = jnp.pad(xs, ((0, Bp - B), (0, 0), (0, 0)))

    # conv1 im2col over the kernel-row index: lanes = ki*28 + w (140 -> 256)
    win = jnp.stack([xs[:, ki:ki + 24, :] for ki in range(5)], axis=2)
    win = win.reshape(Bp, 24, 140)
    win = jnp.pad(win, ((0, 0), (0, 0), (0, 256 - 140)))
    # per block: row = oh * ni + image_in_block
    xc = (win.reshape(nb, ni, 24, 256).transpose(0, 2, 1, 3)
             .reshape(nb * 24 * ni, 256).astype(jnp.bfloat16))

    out = pl.pallas_call(
        _hao_fused_kernel,
        out_shape=jax.ShapeDtypeStruct((Bp, 128), jnp.float32),
        grid_spec=pltpu.PrefetchScalarGridSpec(
            num_scalar_prefetch=0,
            grid=(nb,),
            in_specs=[
                pl.BlockSpec((24 * ni, 256), lambda i: (i, 0)),   # x (im2col)
                pl.BlockSpec((256, 256), lambda i: (0, 0)),       # conv1 wts
                pl.BlockSpec((640, 256), lambda i: (0, 0)),       # conv2 wts
                pl.BlockSpec((512, 128), lambda i: (0, 0)),       # fc1 wts
                pl.BlockSpec((128, 128), lambda i: (0, 0)),       # fc2 wts
                pl.BlockSpec((4, 128), lambda i: (0, 0)),         # biases
            ],
            out_specs=pl.BlockSpec((ni, 128), lambda i: (i, 0)),
            scratch_shapes=[
                pltpu.VMEM((24 * ni, 256), jnp.float32),   # conv1 out (pre-pool)
                pltpu.VMEM((8 * ni, 640), jnp.bfloat16),   # conv2 im2col LHS
                pltpu.VMEM((8 * ni, 256), jnp.float32),    # conv2 out (pre-pool)
                pltpu.VMEM((ni, 512), jnp.bfloat16),       # fc1 input
            ],
        ),
        compiler_params=pltpu.CompilerParams(
            dimension_semantics=("parallel",)),
    )(xc, packed["A1"], packed["B2"], packed["W1s"], packed["W2p"],
      packed["bias"])
    return out[:B, :10]


# ---------------------------------------------------------------------------
# plain-JAX reference for a numerical sanity check
# ---------------------------------------------------------------------------

def hao_reference(params, x):
    def conv(x, w, b):
        y = jax.lax.conv_general_dilated(
            x, w, window_strides=(1, 1), padding="VALID",
            dimension_numbers=("NCHW", "OIHW", "NCHW"))
        return y + b.reshape(1, -1, 1, 1)

    def pool_relu(x):
        y = jax.lax.reduce_window(x, -jnp.inf, jax.lax.max,
                                  (1, 1, 2, 2), (1, 1, 2, 2), "VALID")
        return jnp.maximum(y, 0.0)

    x1 = conv(x, params["conv1_w"], params["conv1_b"])
    x3 = pool_relu(x1)
    x4 = conv(x3, params["conv2_w"], params["conv2_b"])
    x6 = pool_relu(x4)
    x7 = x6.reshape(x6.shape[0], -1)
    h = jnp.maximum(x7 @ params["fc1_w"].T + params["fc1_b"], 0.0)
    logits = h @ params["fc2_w"].T + params["fc2_b"]
    return jax.nn.softmax(logits, axis=1)


if __name__ == "__main__":
    key = jax.random.PRNGKey(0)
    pkey, xkey = jax.random.split(key)
    params = init_params(pkey)
    packed = prepare_packed(params)
    # Smallest shape consistent with the module (fc1 expects 320 = 20*4*4 -> 28x28)
    x = jax.random.normal(xkey, (2, 1, 28, 28), jnp.float32)

    out = jax.block_until_ready(hao_forward(packed, x))
    ref = jax.block_until_ready(hao_reference(params, x))

    assert out.shape == (2, 10)
    assert bool(jnp.allclose(jnp.sum(out, axis=1), 1.0, atol=1e-2))
    assert bool(jnp.allclose(out, ref, atol=2e-2)), float(jnp.max(jnp.abs(out - ref)))
    print("KERNEL_OK")
</pallas_src>

<mosaic_0001>
module attributes {stable_mosaic.version = 11 : i64} {
  func.func @_hao_fused_kernel(%arg0: i32, %arg1: memref<192x256xbf16, #tpu.memory_space<vmem>>, %arg2: memref<256x256xbf16, #tpu.memory_space<vmem>>, %arg3: memref<640x256xbf16, #tpu.memory_space<vmem>>, %arg4: memref<512x128xbf16, #tpu.memory_space<vmem>>, %arg5: memref<128x128xbf16, #tpu.memory_space<vmem>>, %arg6: memref<4x128xf32, #tpu.memory_space<vmem>>, %arg7: memref<8x128xf32, #tpu.memory_space<vmem>>, %arg8: memref<192x256xf32, #tpu.memory_space<vmem>>, %arg9: memref<64x640xbf16, #tpu.memory_space<vmem>>, %arg10: memref<64x256xf32, #tpu.memory_space<vmem>>, %arg11: memref<8x512xbf16, #tpu.memory_space<vmem>>) attributes {dimension_semantics = [#tpu.dimension_semantics<parallel>], iteration_bounds = array<i64: 1>, scalar_prefetch = 0 : i64, scratch_operands = 4 : i64, tpu.core_type = #tpu.core_type<tc>, window_params = [{transform_indices = @transform_0, window_bounds = array<i64: 192, 256>}, {pipeline_mode = #tpu.pipeline_mode<synchronous>, transform_indices = @transform_1, window_bounds = array<i64: 256, 256>}, {pipeline_mode = #tpu.pipeline_mode<synchronous>, transform_indices = @transform_2, window_bounds = array<i64: 640, 256>}, {pipeline_mode = #tpu.pipeline_mode<synchronous>, transform_indices = @transform_3, window_bounds = array<i64: 512, 128>}, {pipeline_mode = #tpu.pipeline_mode<synchronous>, transform_indices = @transform_4, window_bounds = array<i64: 128, 128>}, {pipeline_mode = #tpu.pipeline_mode<synchronous>, transform_indices = @transform_5, window_bounds = array<i64: 4, 128>}, {transform_indices = @transform_6, window_bounds = array<i64: 8, 128>}]} {
    %c0 = arith.constant 0 : index
    %c0_0 = arith.constant 0 : index
    %0 = vector.load %arg1[%c0, %c0_0] : memref<192x256xbf16, #tpu.memory_space<vmem>>, vector<192x256xbf16>
    %c0_1 = arith.constant 0 : index
    %c0_2 = arith.constant 0 : index
    %1 = vector.load %arg2[%c0_1, %c0_2] : memref<256x256xbf16, #tpu.memory_space<vmem>>, vector<256x256xbf16>
    %cst = arith.constant dense<0.000000e+00> : vector<192x256xf32>
    %2 = tpu.matmul %0, %1, %cst {dimension_numbers = #tpu.dot_dimension_numbers<[1], [0], [0], [1], [0, 0, 1, 1], [], []>} : vector<192x256xbf16>, vector<256x256xbf16>, vector<192x256xf32> -> vector<192x256xf32>
    %c0_3 = arith.constant 0 : index
    %c0_4 = arith.constant 0 : index
    %3 = vector.load %arg8[%c0_3, %c0_4] : memref<192x256xf32, #tpu.memory_space<vmem>>, vector<192x256xf32>
    tpu.vector_store %arg8[%c0_3, %c0_4], %2 {strides = array<i32>} : memref<192x256xf32, #tpu.memory_space<vmem>>, vector<192x256xf32>,
    %c0_5 = arith.constant 0 : index
    %c0_6 = arith.constant 0 : index
    %4 = vector.load %arg6[%c0_5, %c0_6] : memref<4x128xf32, #tpu.memory_space<vmem>>, vector<1x128xf32>
    %c0_7 = arith.constant 0 : index
    %c0_8 = arith.constant 0 : index
    %5 = vector.load %arg8[%c0_7, %c0_8] : memref<192x256xf32, #tpu.memory_space<vmem>>, vector<8x256xf32>
    %c8 = arith.constant 8 : index
    %c0_9 = arith.constant 0 : index
    %6 = vector.load %arg8[%c8, %c0_9] : memref<192x256xf32, #tpu.memory_space<vmem>>, vector<8x256xf32>
    %7 = arith.maximumf %5, %6 : vector<8x256xf32>
    %8 = vector.extract_strided_slice %7 {offsets = [0, 0], sizes = [8, 128], strides = [1, 1]} : vector<8x256xf32> to vector<8x128xf32>
    %9 = vector.extract_strided_slice %7 {offsets = [0, 128], sizes = [8, 128], strides = [1, 1]} : vector<8x256xf32> to vector<8x128xf32>
    %10 = arith.maximumf %8, %9 : vector<8x128xf32>
    %11 = vector.broadcast %4 : vector<1x128xf32> to vector<8x128xf32>
    %12 = arith.addf %10, %11 : vector<8x128xf32>
    %cst_10 = arith.constant 0.000000e+00 : f32
    %13 = vector.broadcast %cst_10 : f32 to vector<8x128xf32>
    %14 = arith.maximumf %12, %13 : vector<8x128xf32>
    %15 = arith.truncf %14 : vector<8x128xf32> to vector<8x128xbf16>
    %c0_11 = arith.constant 0 : index
    %c0_12 = arith.constant 0 : index
    %16 = vector.load %arg9[%c0_11, %c0_12] : memref<64x640xbf16, #tpu.memory_space<vmem>>, vector<8x128xbf16>
    tpu.vector_store %arg9[%c0_11, %c0_12], %15 {strides = array<i32>} : memref<64x640xbf16, #tpu.memory_space<vmem>>, vector<8x128xbf16>,
    %c16 = arith.constant 16 : index
    %c0_13 = arith.constant 0 : index
    %17 = vector.load %arg8[%c16, %c0_13] : memref<192x256xf32, #tpu.memory_space<vmem>>, vector<8x256xf32>
    %c24 = arith.constant 24 : index
    %c0_14 = arith.constant 0 : index
    %18 = vector.load %arg8[%c24, %c0_14] : memref<192x256xf32, #tpu.memory_space<vmem>>, vector<8x256xf32>
    %19 = arith.maximumf %17, %18 : vector<8x256xf32>
    %20 = vector.extract_strided_slice %19 {offsets = [0, 0], sizes = [8, 128], strides = [1, 1]} : vector<8x256xf32> to vector<8x128xf32>
    %21 = vector.extract_strided_slice %19 {offsets = [0, 128], sizes = [8, 128], strides = [1, 1]} : vector<8x256xf32> to vector<8x128xf32>
    %22 = arith.maximumf %20, %21 : vector<8x128xf32>
    %23 = vector.broadcast %4 : vector<1x128xf32> to vector<8x128xf32>
    %24 = arith.addf %22, %23 : vector<8x128xf32>
    %cst_15 = arith.constant 0.000000e+00 : f32
    %25 = vector.broadcast %cst_15 : f32 to vector<8x128xf32>
    %26 = arith.maximumf %24, %25 : vector<8x128xf32>
    %27 = arith.truncf %26 : vector<8x128xf32> to vector<8x128xbf16>
    %c8_16 = arith.constant 8 : index
    %c0_17 = arith.constant 0 : index
    %28 = vector.load %arg9[%c8_16, %c0_17] : memref<64x640xbf16, #tpu.memory_space<vmem>>, vector<8x128xbf16>
    tpu.vector_store %arg9[%c8_16, %c0_17], %27 {strides = array<i32>} : memref<64x640xbf16, #tpu.memory_space<vmem>>, vector<8x128xbf16>,
    %c0_18 = arith.constant 0 : index
    %c128 = arith.constant 128 : index
    %29 = vector.load %arg9[%c0_18, %c128] : memref<64x640xbf16, #tpu.memory_space<vmem>>, vector<8x128xbf16>
    tpu.vector_store %arg9[%c0_18, %c128], %27 {strides = array<i32>} : memref<64x640xbf16, #tpu.memory_space<vmem>>, vector<8x128xbf16>,
    %c32 = arith.constant 32 : index
    %c0_19 = arith.constant 0 : index
    %30 = vector.load %arg8[%c32, %c0_19] : memref<192x256xf32, #tpu.memory_space<vmem>>, vector<8x256xf32>
    %c40 = arith.constant 40 : index
    %c0_20 = arith.constant 0 : index
    %31 = vector.load %arg8[%c40, %c0_20] : memref<192x256xf32, #tpu.memory_space<vmem>>, vector<8x256xf32>
    %32 = arith.maximumf %30, %31 : vector<8x256xf32>
    %33 = vector.extract_strided_slice %32 {offsets = [0, 0], sizes = [8, 128], strides = [1, 1]} : vector<8x256xf32> to vector<8x128xf32>
    %34 = vector.extract_strided_slice %32 {offsets = [0, 128], sizes = [8, 128], strides = [1, 1]} : vector<8x256xf32> to vector<8x128xf32>
    %35 = arith.maximumf %33, %34 : vector<8x128xf32>
    %36 = vector.broadcast %4 : vector<1x128xf32> to vector<8x128xf32>
    %37 = arith.addf %35, %36 : vector<8x128xf32>
    %cst_21 = arith.constant 0.000000e+00 : f32
    %38 = vector.broadcast %cst_21 : f32 to vector<8x128xf32>
    %39 = arith.maximumf %37, %38 : vector<8x128xf32>
    %40 = arith.truncf %39 : vector<8x128xf32> to vector<8x128xbf16>
    %c16_22 = arith.constant 16 : index
    %c0_23 = arith.constant 0 : index
    %41 = vector.load %arg9[%c16_22, %c0_23] : memref<64x640xbf16, #tpu.memory_space<vmem>>, vector<8x128xbf16>
    tpu.vector_store %arg9[%c16_22, %c0_23], %40 {strides = array<i32>} : memref<64x640xbf16, #tpu.memory_space<vmem>>, vector<8x128xbf16>,
    %c8_24 = arith.constant 8 : index
    %c128_25 = arith.constant 128 : index
    %42 = vector.load %arg9[%c8_24, %c128_25] : memref<64x640xbf16, #tpu.memory_space<vmem>>, vector<8x128xbf16>
    tpu.vector_store %arg9[%c8_24, %c128_25], %40 {strides = array<i32>} : memref<64x640xbf16, #tpu.memory_space<vmem>>, vector<8x128xbf16>,
    %c0_26 = arith.constant 0 : index
    %c256 = arith.constant 256 : index
    %43 = vector.load %arg9[%c0_26, %c256] : memref<64x640xbf16, #tpu.memory_space<vmem>>, vector<8x128xbf16>
    tpu.vector_store %arg9[%c0_26, %c256], %40 {strides = array<i32>} : memref<64x640xbf16, #tpu.memory_space<vmem>>, vector<8x128xbf16>,
    %c48 = arith.constant 48 : index
    %c0_27 = arith.constant 0 : index
    %44 = vector.load %arg8[%c48, %c0_27] : memref<192x256xf32, #tpu.memory_space<vmem>>, vector<8x256xf32>
    %c56 = arith.constant 56 : index
    %c0_28 = arith.constant 0 : index
    %45 = vector.load %arg8[%c56, %c0_28] : memref<192x256xf32, #tpu.memory_space<vmem>>, vector<8x256xf32>
    %46 = arith.maximumf %44, %45 : vector<8x256xf32>
    %47 = vector.extract_strided_slice %46 {offsets = [0, 0], sizes = [8, 128], strides = [1, 1]} : vector<8x256xf32> to vector<8x128xf32>
    %48 = vector.extract_strided_slice %46 {offsets = [0, 128], sizes = [8, 128], strides = [1, 1]} : vector<8x256xf32> to vector<8x128xf32>
    %49 = arith.maximumf %47, %48 : vector<8x128xf32>
    %50 = vector.broadcast %4 : vector<1x128xf32> to vector<8x128xf32>
    %51 = arith.addf %49, %50 : vector<8x128xf32>
    %cst_29 = arith.constant 0.000000e+00 : f32
    %52 = vector.broadcast %cst_29 : f32 to vector<8x128xf32>
    %53 = arith.maximumf %51, %52 : vector<8x128xf32>
    %54 = arith.truncf %53 : vector<8x128xf32> to vector<8x128xbf16>
    %c24_30 = arith.constant 24 : index
    %c0_31 = arith.constant 0 : index
    %55 = vector.load %arg9[%c24_30, %c0_31] : memref<64x640xbf16, #tpu.memory_space<vmem>>, vector<8x128xbf16>
    tpu.vector_store %arg9[%c24_30, %c0_31], %54 {strides = array<i32>} : memref<64x640xbf16, #tpu.memory_space<vmem>>, vector<8x128xbf16>,
    %c16_32 = arith.constant 16 : index
    %c128_33 = arith.constant 128 : index
    %56 = vector.load %arg9[%c16_32, %c128_33] : memref<64x640xbf16, #tpu.memory_space<vmem>>, vector<8x128xbf16>
    tpu.vector_store %arg9[%c16_32, %c128_33], %54 {strides = array<i32>} : memref<64x640xbf16, #tpu.memory_space<vmem>>, vector<8x128xbf16>,
    %c8_34 = arith.constant 8 : index
    %c256_35 = arith.constant 256 : index
    %57 = vector.load %arg9[%c8_34, %c256_35] : memref<64x640xbf16, #tpu.memory_space<vmem>>, vector<8x128xbf16>
    tpu.vector_store %arg9[%c8_34, %c256_35], %54 {strides = array<i32>} : memref<64x640xbf16, #tpu.memory_space<vmem>>, vector<8x128xbf16>,
    %c0_36 = arith.constant 0 : index
    %c384 = arith.constant 384 : index
    %58 = vector.load %arg9[%c0_36, %c384] : memref<64x640xbf16, #tpu.memory_space<vmem>>, vector<8x128xbf16>
    tpu.vector_store %arg9[%c0_36, %c384], %54 {strides = array<i32>} : memref<64x640xbf16, #tpu.memory_space<vmem>>, vector<8x128xbf16>,
    %c64 = arith.constant 64 : index
    %c0_37 = arith.constant 0 : index
    %59 = vector.load %arg8[%c64, %c0_37] : memref<192x256xf32, #tpu.memory_space<vmem>>, vector<8x256xf32>
    %c72 = arith.constant 72 : index
    %c0_38 = arith.constant 0 : index
    %60 = vector.load %arg8[%c72, %c0_38] : memref<192x256xf32, #tpu.memory_space<vmem>>, vector<8x256xf32>
    %61 = arith.maximumf %59, %60 : vector<8x256xf32>
    %62 = vector.extract_strided_slice %61 {offsets = [0, 0], sizes = [8, 128], strides = [1, 1]} : vector<8x256xf32> to vector<8x128xf32>
    %63 = vector.extract_strided_slice %61 {offsets = [0, 128], sizes = [8, 128], strides = [1, 1]} : vector<8x256xf32> to vector<8x128xf32>
    %64 = arith.maximumf %62, %63 : vector<8x128xf32>
    %65 = vector.broadcast %4 : vector<1x128xf32> to vector<8x128xf32>
    %66 = arith.addf %64, %65 : vector<8x128xf32>
    %cst_39 = arith.constant 0.000000e+00 : f32
    %67 = vector.broadcast %cst_39 : f32 to vector<8x128xf32>
    %68 = arith.maximumf %66, %67 : vector<8x128xf32>
    %69 = arith.truncf %68 : vector<8x128xf32> to vector<8x128xbf16>
    %c32_40 = arith.constant 32 : index
    %c0_41 = arith.constant 0 : index
    %70 = vector.load %arg9[%c32_40, %c0_41] : memref<64x640xbf16, #tpu.memory_space<vmem>>, vector<8x128xbf16>
    tpu.vector_store %arg9[%c32_40, %c0_41], %69 {strides = array<i32>} : memref<64x640xbf16, #tpu.memory_space<vmem>>, vector<8x128xbf16>,
    %c24_42 = arith.constant 24 : index
    %c128_43 = arith.constant 128 : index
    %71 = vector.load %arg9[%c24_42, %c128_43] : memref<64x640xbf16, #tpu.memory_space<vmem>>, vector<8x128xbf16>
    tpu.vector_store %arg9[%c24_42, %c128_43], %69 {strides = array<i32>} : memref<64x640xbf16, #tpu.memory_space<vmem>>, vector<8x128xbf16>,
    %c16_44 = arith.constant 16 : index
    %c256_45 = arith.constant 256 : index
    %72 = vector.load %arg9[%c16_44, %c256_45] : memref<64x640xbf16, #tpu.memory_space<vmem>>, vector<8x128xbf16>
    tpu.vector_store %arg9[%c16_44, %c256_45], %69 {strides = array<i32>} : memref<64x640xbf16, #tpu.memory_space<vmem>>, vector<8x128xbf16>,
    %c8_46 = arith.constant 8 : index
    %c384_47 = arith.constant 384 : index
    %73 = vector.load %arg9[%c8_46, %c384_47] : memref<64x640xbf16, #tpu.memory_space<vmem>>, vector<8x128xbf16>
    tpu.vector_store %arg9[%c8_46, %c384_47], %69 {strides = array<i32>} : memref<64x640xbf16, #tpu.memory_space<vmem>>, vector<8x128xbf16>,
    %c0_48 = arith.constant 0 : index
    %c512 = arith.constant 512 : index
    %74 = vector.load %arg9[%c0_48, %c512] : memref<64x640xbf16, #tpu.memory_space<vmem>>, vector<8x128xbf16>
    tpu.vector_store %arg9[%c0_48, %c512], %69 {strides = array<i32>} : memref<64x640xbf16, #tpu.memory_space<vmem>>, vector<8x128xbf16>,
    %c80 = arith.constant 80 : index
    %c0_49 = arith.constant 0 : index
    %75 = vector.load %arg8[%c80, %c0_49] : memref<192x256xf32, #tpu.memory_space<vmem>>, vector<8x256xf32>
    %c88 = arith.constant 88 : index
    %c0_50 = arith.constant 0 : index
    %76 = vector.load %arg8[%c88, %c0_50] : memref<192x256xf32, #tpu.memory_space<vmem>>, vector<8x256xf32>
    %77 = arith.maximumf %75, %76 : vector<8x256xf32>
    %78 = vector.extract_strided_slice %77 {offsets = [0, 0], sizes = [8, 128], strides = [1, 1]} : vector<8x256xf32> to vector<8x128xf32>
    %79 = vector.extract_strided_slice %77 {offsets = [0, 128], sizes = [8, 128], strides = [1, 1]} : vector<8x256xf32> to vector<8x128xf32>
    %80 = arith.maximumf %78, %79 : vector<8x128xf32>
    %81 = vector.broadcast %4 : vector<1x128xf32> to vector<8x128xf32>
    %82 = arith.addf %80, %81 : vector<8x128xf32>
    %cst_51 = arith.constant 0.000000e+00 : f32
    %83 = vector.broadcast %cst_51 : f32 to vector<8x128xf32>
    %84 = arith.maximumf %82, %83 : vector<8x128xf32>
    %85 = arith.truncf %84 : vector<8x128xf32> to vector<8x128xbf16>
    %c40_52 = arith.constant 40 : index
    %c0_53 = arith.constant 0 : index
    %86 = vector.load %arg9[%c40_52, %c0_53] : memref<64x640xbf16, #tpu.memory_space<vmem>>, vector<8x128xbf16>
    tpu.vector_store %arg9[%c40_52, %c0_53], %85 {strides = array<i32>} : memref<64x640xbf16, #tpu.memory_space<vmem>>, vector<8x128xbf16>,
    %c32_54 = arith.constant 32 : index
    %c128_55 = arith.constant 128 : index
    %87 = vector.load %arg9[%c32_54, %c128_55] : memref<64x640xbf16, #tpu.memory_space<vmem>>, vector<8x128xbf16>
    tpu.vector_store %arg9[%c32_54, %c128_55], %85 {strides = array<i32>} : memref<64x640xbf16, #tpu.memory_space<vmem>>, vector<8x128xbf16>,
    %c24_56 = arith.constant 24 : index
    %c256_57 = arith.constant 256 : index
    %88 = vector.load %arg9[%c24_56, %c256_57] : memref<64x640xbf16, #tpu.memory_space<vmem>>, vector<8x128xbf16>
    tpu.vector_store %arg9[%c24_56, %c256_57], %85 {strides = array<i32>} : memref<64x640xbf16, #tpu.memory_space<vmem>>, vector<8x128xbf16>,
    %c16_58 = arith.constant 16 : index
    %c384_59 = arith.constant 384 : index
    %89 = vector.load %arg9[%c16_58, %c384_59] : memref<64x640xbf16, #tpu.memory_space<vmem>>, vector<8x128xbf16>
    tpu.vector_store %arg9[%c16_58, %c384_59], %85 {strides = array<i32>} : memref<64x640xbf16, #tpu.memory_space<vmem>>, vector<8x128xbf16>,
    %c8_60 = arith.constant 8 : index
    %c512_61 = arith.constant 512 : index
    %90 = vector.load %arg9[%c8_60, %c512_61] : memref<64x640xbf16, #tpu.memory_space<vmem>>, vector<8x128xbf16>
    tpu.vector_store %arg9[%c8_60, %c512_61], %85 {strides = array<i32>} : memref<64x640xbf16, #tpu.memory_space<vmem>>, vector<8x128xbf16>,
    %c96 = arith.constant 96 : index
    %c0_62 = arith.constant 0 : index
    %91 = vector.load %arg8[%c96, %c0_62] : memref<192x256xf32, #tpu.memory_space<vmem>>, vector<8x256xf32>
    %c104 = arith.constant 104 : index
    %c0_63 = arith.constant 0 : index
    %92 = vector.load %arg8[%c104, %c0_63] : memref<192x256xf32, #tpu.memory_space<vmem>>, vector<8x256xf32>
    %93 = arith.maximumf %91, %92 : vector<8x256xf32>
    %94 = vector.extract_strided_slice %93 {offsets = [0, 0], sizes = [8, 128], strides = [1, 1]} : vector<8x256xf32> to vector<8x128xf32>
    %95 = vector.extract_strided_slice %93 {offsets = [0, 128], sizes = [8, 128], strides = [1, 1]} : vector<8x256xf32> to vector<8x128xf32>
    %96 = arith.maximumf %94, %95 : vector<8x128xf32>
    %97 = vector.broadcast %4 : vector<1x128xf32> to vector<8x128xf32>
    %98 = arith.addf %96, %97 : vector<8x128xf32>
    %cst_64 = arith.constant 0.000000e+00 : f32
    %99 = vector.broadcast %cst_64 : f32 to vector<8x128xf32>
    %100 = arith.maximumf %98, %99 : vector<8x128xf32>
    %101 = arith.truncf %100 : vector<8x128xf32> to vector<8x128xbf16>
    %c48_65 = arith.constant 48 : index
    %c0_66 = arith.constant 0 : index
    %102 = vector.load %arg9[%c48_65, %c0_66] : memref<64x640xbf16, #tpu.memory_space<vmem>>, vector<8x128xbf16>
    tpu.vector_store %arg9[%c48_65, %c0_66], %101 {strides = array<i32>} : memref<64x640xbf16, #tpu.memory_space<vmem>>, vector<8x128xbf16>,
    %c40_67 = arith.constant 40 : index
    %c128_68 = arith.constant 128 : index
    %103 = vector.load %arg9[%c40_67, %c128_68] : memref<64x640xbf16, #tpu.memory_space<vmem>>, vector<8x128xbf16>
    tpu.vector_store %arg9[%c40_67, %c128_68], %101 {strides = array<i32>} : memref<64x640xbf16, #tpu.memory_space<vmem>>, vector<8x128xbf16>,
    %c32_69 = arith.constant 32 : index
    %c256_70 = arith.constant 256 : index
    %104 = vector.load %arg9[%c32_69, %c256_70] : memref<64x640xbf16, #tpu.memory_space<vmem>>, vector<8x128xbf16>
    tpu.vector_store %arg9[%c32_69, %c256_70], %101 {strides = array<i32>} : memref<64x640xbf16, #tpu.memory_space<vmem>>, vector<8x128xbf16>,
    %c24_71 = arith.constant 24 : index
    %c384_72 = arith.constant 384 : index
    %105 = vector.load %arg9[%c24_71, %c384_72] : memref<64x640xbf16, #tpu.memory_space<vmem>>, vector<8x128xbf16>
    tpu.vector_store %arg9[%c24_71, %c384_72], %101 {strides = array<i32>} : memref<64x640xbf16, #tpu.memory_space<vmem>>, vector<8x128xbf16>,
    %c16_73 = arith.constant 16 : index
    %c512_74 = arith.constant 512 : index
    %106 = vector.load %arg9[%c16_73, %c512_74] : memref<64x640xbf16, #tpu.memory_space<vmem>>, vector<8x128xbf16>
    tpu.vector_store %arg9[%c16_73, %c512_74], %101 {strides = array<i32>} : memref<64x640xbf16, #tpu.memory_space<vmem>>, vector<8x128xbf16>,
    %c112 = arith.constant 112 : index
    %c0_75 = arith.constant 0 : index
    %107 = vector.load %arg8[%c112, %c0_75] : memref<192x256xf32, #tpu.memory_space<vmem>>, vector<8x256xf32>
    %c120 = arith.constant 120 : index
    %c0_76 = arith.constant 0 : index
    %108 = vector.load %arg8[%c120, %c0_76] : memref<192x256xf32, #tpu.memory_space<vmem>>, vector<8x256xf32>
    %109 = arith.maximumf %107, %108 : vector<8x256xf32>
    %110 = vector.extract_strided_slice %109 {offsets = [0, 0], sizes = [8, 128], strides = [1, 1]} : vector<8x256xf32> to vector<8x128xf32>
    %111 = vector.extract_strided_slice %109 {offsets = [0, 128], sizes = [8, 128], strides = [1, 1]} : vector<8x256xf32> to vector<8x128xf32>
    %112 = arith.maximumf %110, %111 : vector<8x128xf32>
    %113 = vector.broadcast %4 : vector<1x128xf32> to vector<8x128xf32>
    %114 = arith.addf %112, %113 : vector<8x128xf32>
    %cst_77 = arith.constant 0.000000e+00 : f32
    %115 = vector.broadcast %cst_77 : f32 to vector<8x128xf32>
    %116 = arith.maximumf %114, %115 : vector<8x128xf32>
    %117 = arith.truncf %116 : vector<8x128xf32> to vector<8x128xbf16>
    %c56_78 = arith.constant 56 : index
    %c0_79 = arith.constant 0 : index
    %118 = vector.load %arg9[%c56_78, %c0_79] : memref<64x640xbf16, #tpu.memory_space<vmem>>, vector<8x128xbf16>
    tpu.vector_store %arg9[%c56_78, %c0_79], %117 {strides = array<i32>} : memref<64x640xbf16, #tpu.memory_space<vmem>>, vector<8x128xbf16>,
    %c48_80 = arith.constant 48 : index
    %c128_81 = arith.constant 128 : index
    %119 = vector.load %arg9[%c48_80, %c128_81] : memref<64x640xbf16, #tpu.memory_space<vmem>>, vector<8x128xbf16>
    tpu.vector_store %arg9[%c48_80, %c128_81], %117 {strides = array<i32>} : memref<64x640xbf16, #tpu.memory_space<vmem>>, vector<8x128xbf16>,
    %c40_82 = arith.constant 40 : index
    %c256_83 = arith.constant 256 : index
    %120 = vector.load %arg9[%c40_82, %c256_83] : memref<64x640xbf16, #tpu.memory_space<vmem>>, vector<8x128xbf16>
    tpu.vector_store %arg9[%c40_82, %c256_83], %117 {strides = array<i32>} : memref<64x640xbf16, #tpu.memory_space<vmem>>, vector<8x128xbf16>,
    %c32_84 = arith.constant 32 : index
    %c384_85 = arith.constant 384 : index
    %121 = vector.load %arg9[%c32_84, %c384_85] : memref<64x640xbf16, #tpu.memory_space<vmem>>, vector<8x128xbf16>
    tpu.vector_store %arg9[%c32_84, %c384_85], %117 {strides = array<i32>} : memref<64x640xbf16, #tpu.memory_space<vmem>>, vector<8x128xbf16>,
    %c24_86 = arith.constant 24 : index
    %c512_87 = arith.constant 512 : index
    %122 = vector.load %arg9[%c24_86, %c512_87] : memref<64x640xbf16, #tpu.memory_space<vmem>>, vector<8x128xbf16>
    tpu.vector_store %arg9[%c24_86, %c512_87], %117 {strides = array<i32>} : memref<64x640xbf16, #tpu.memory_space<vmem>>, vector<8x128xbf16>,
    %c128_88 = arith.constant 128 : index
    %c0_89 = arith.constant 0 : index
    %123 = vector.load %arg8[%c128_88, %c0_89] : memref<192x256xf32, #tpu.memory_space<vmem>>, vector<8x256xf32>
    %c136 = arith.constant 136 : index
    %c0_90 = arith.constant 0 : index
    %124 = vector.load %arg8[%c136, %c0_90] : memref<192x256xf32, #tpu.memory_space<vmem>>, vector<8x256xf32>
    %125 = arith.maximumf %123, %124 : vector<8x256xf32>
    %126 = vector.extract_strided_slice %125 {offsets = [0, 0], sizes = [8, 128], strides = [1, 1]} : vector<8x256xf32> to vector<8x128xf32>
    %127 = vector.extract_strided_slice %125 {offsets = [0, 128], sizes = [8, 128], strides = [1, 1]} : vector<8x256xf32> to vector<8x128xf32>
    %128 = arith.maximumf %126, %127 : vector<8x128xf32>
    %129 = vector.broadcast %4 : vector<1x128xf32> to vector<8x128xf32>
    %130 = arith.addf %128, %129 : vector<8x128xf32>
    %cst_91 = arith.constant 0.000000e+00 : f32
    %131 = vector.broadcast %cst_91 : f32 to vector<8x128xf32>
    %132 = arith.maximumf %130, %131 : vector<8x128xf32>
    %133 = arith.truncf %132 : vector<8x128xf32> to vector<8x128xbf16>
    %c56_92 = arith.constant 56 : index
    %c128_93 = arith.constant 128 : index
    %134 = vector.load %arg9[%c56_92, %c128_93] : memref<64x640xbf16, #tpu.memory_space<vmem>>, vector<8x128xbf16>
    tpu.vector_store %arg9[%c56_92, %c128_93], %133 {strides = array<i32>} : memref<64x640xbf16, #tpu.memory_space<vmem>>, vector<8x128xbf16>,
    %c48_94 = arith.constant 48 : index
    %c256_95 = arith.constant 256 : index
    %135 = vector.load %arg9[%c48_94, %c256_95] : memref<64x640xbf16, #tpu.memory_space<vmem>>, vector<8x128xbf16>
    tpu.vector_store %arg9[%c48_94, %c256_95], %133 {strides = array<i32>} : memref<64x640xbf16, #tpu.memory_space<vmem>>, vector<8x128xbf16>,
    %c40_96 = arith.constant 40 : index
    %c384_97 = arith.constant 384 : index
    %136 = vector.load %arg9[%c40_96, %c384_97] : memref<64x640xbf16, #tpu.memory_space<vmem>>, vector<8x128xbf16>
    tpu.vector_store %arg9[%c40_96, %c384_97], %133 {strides = array<i32>} : memref<64x640xbf16, #tpu.memory_space<vmem>>, vector<8x128xbf16>,
    %c32_98 = arith.constant 32 : index
    %c512_99 = arith.constant 512 : index
    %137 = vector.load %arg9[%c32_98, %c512_99] : memref<64x640xbf16, #tpu.memory_space<vmem>>, vector<8x128xbf16>
    tpu.vector_store %arg9[%c32_98, %c512_99], %133 {strides = array<i32>} : memref<64x640xbf16, #tpu.memory_space<vmem>>, vector<8x128xbf16>,
    %c144 = arith.constant 144 : index
    %c0_100 = arith.constant 0 : index
    %138 = vector.load %arg8[%c144, %c0_100] : memref<192x256xf32, #tpu.memory_space<vmem>>, vector<8x256xf32>
    %c152 = arith.constant 152 : index
    %c0_101 = arith.constant 0 : index
    %139 = vector.load %arg8[%c152, %c0_101] : memref<192x256xf32, #tpu.memory_space<vmem>>, vector<8x256xf32>
    %140 = arith.maximumf %138, %139 : vector<8x256xf32>
    %141 = vector.extract_strided_slice %140 {offsets = [0, 0], sizes = [8, 128], strides = [1, 1]} : vector<8x256xf32> to vector<8x128xf32>
    %142 = vector.extract_strided_slice %140 {offsets = [0, 128], sizes = [8, 128], strides = [1, 1]} : vector<8x256xf32> to vector<8x128xf32>
    %143 = arith.maximumf %141, %142 : vector<8x128xf32>
    %144 = vector.broadcast %4 : vector<1x128xf32> to vector<8x128xf32>
    %145 = arith.addf %143, %144 : vector<8x128xf32>
    %cst_102 = arith.constant 0.000000e+00 : f32
    %146 = vector.broadcast %cst_102 : f32 to vector<8x128xf32>
    %147 = arith.maximumf %145, %146 : vector<8x128xf32>
    %148 = arith.truncf %147 : vector<8x128xf32> to vector<8x128xbf16>
    %c56_103 = arith.constant 56 : index
    %c256_104 = arith.constant 256 : index
    %149 = vector.load %arg9[%c56_103, %c256_104] : memref<64x640xbf16, #tpu.memory_space<vmem>>, vector<8x128xbf16>
    tpu.vector_store %arg9[%c56_103, %c256_104], %148 {strides = array<i32>} : memref<64x640xbf16, #tpu.memory_space<vmem>>, vector<8x128xbf16>,
    %c48_105 = arith.constant 48 : index
    %c384_106 = arith.constant 384 : index
    %150 = vector.load %arg9[%c48_105, %c384_106] : memref<64x640xbf16, #tpu.memory_space<vmem>>, vector<8x128xbf16>
    tpu.vector_store %arg9[%c48_105, %c384_106], %148 {strides = array<i32>} : memref<64x640xbf16, #tpu.memory_space<vmem>>, vector<8x128xbf16>,
    %c40_107 = arith.constant 40 : index
    %c512_108 = arith.constant 512 : index
    %151 = vector.load %arg9[%c40_107, %c512_108] : memref<64x640xbf16, #tpu.memory_space<vmem>>, vector<8x128xbf16>
    tpu.vector_store %arg9[%c40_107, %c512_108], %148 {strides = array<i32>} : memref<64x640xbf16, #tpu.memory_space<vmem>>, vector<8x128xbf16>,
    %c160 = arith.constant 160 : index
    %c0_109 = arith.constant 0 : index
    %152 = vector.load %arg8[%c160, %c0_109] : memref<192x256xf32, #tpu.memory_space<vmem>>, vector<8x256xf32>
    %c168 = arith.constant 168 : index
    %c0_110 = arith.constant 0 : index
    %153 = vector.load %arg8[%c168, %c0_110] : memref<192x256xf32, #tpu.memory_space<vmem>>, vector<8x256xf32>
    %154 = arith.maximumf %152, %153 : vector<8x256xf32>
    %155 = vector.extract_strided_slice %154 {offsets = [0, 0], sizes = [8, 128], strides = [1, 1]} : vector<8x256xf32> to vector<8x128xf32>
    %156 = vector.extract_strided_slice %154 {offsets = [0, 128], sizes = [8, 128], strides = [1, 1]} : vector<8x256xf32> to vector<8x128xf32>
    %157 = arith.maximumf %155, %156 : vector<8x128xf32>
    %158 = vector.broadcast %4 : vector<1x128xf32> to vector<8x128xf32>
    %159 = arith.addf %157, %158 : vector<8x128xf32>
    %cst_111 = arith.constant 0.000000e+00 : f32
    %160 = vector.broadcast %cst_111 : f32 to vector<8x128xf32>
    %161 = arith.maximumf %159, %160 : vector<8x128xf32>
    %162 = arith.truncf %161 : vector<8x128xf32> to vector<8x128xbf16>
    %c56_112 = arith.constant 56 : index
    %c384_113 = arith.constant 384 : index
    %163 = vector.load %arg9[%c56_112, %c384_113] : memref<64x640xbf16, #tpu.memory_space<vmem>>, vector<8x128xbf16>
    tpu.vector_store %arg9[%c56_112, %c384_113], %162 {strides = array<i32>} : memref<64x640xbf16, #tpu.memory_space<vmem>>, vector<8x128xbf16>,
    %c48_114 = arith.constant 48 : index
    %c512_115 = arith.constant 512 : index
    %164 = vector.load %arg9[%c48_114, %c512_115] : memref<64x640xbf16, #tpu.memory_space<vmem>>, vector<8x128xbf16>
    tpu.vector_store %arg9[%c48_114, %c512_115], %162 {strides = array<i32>} : memref<64x640xbf16, #tpu.memory_space<vmem>>, vector<8x128xbf16>,
    %c176 = arith.constant 176 : index
    %c0_116 = arith.constant 0 : index
    %165 = vector.load %arg8[%c176, %c0_116] : memref<192x256xf32, #tpu.memory_space<vmem>>, vector<8x256xf32>
    %c184 = arith.constant 184 : index
    %c0_117 = arith.constant 0 : index
    %166 = vector.load %arg8[%c184, %c0_117] : memref<192x256xf32, #tpu.memory_space<vmem>>, vector<8x256xf32>
    %167 = arith.maximumf %165, %166 : vector<8x256xf32>
    %168 = vector.extract_strided_slice %167 {offsets = [0, 0], sizes = [8, 128], strides = [1, 1]} : vector<8x256xf32> to vector<8x128xf32>
    %169 = vector.extract_strided_slice %167 {offsets = [0, 128], sizes = [8, 128], strides = [1, 1]} : vector<8x256xf32> to vector<8x128xf32>
    %170 = arith.maximumf %168, %169 : vector<8x128xf32>
    %171 = vector.broadcast %4 : vector<1x128xf32> to vector<8x128xf32>
    %172 = arith.addf %170, %171 : vector<8x128xf32>
    %cst_118 = arith.constant 0.000000e+00 : f32
    %173 = vector.broadcast %cst_118 : f32 to vector<8x128xf32>
    %174 = arith.maximumf %172, %173 : vector<8x128xf32>
    %175 = arith.truncf %174 : vector<8x128xf32> to vector<8x128xbf16>
    %c56_119 = arith.constant 56 : index
    %c512_120 = arith.constant 512 : index
    %176 = vector.load %arg9[%c56_119, %c512_120] : memref<64x640xbf16, #tpu.memory_space<vmem>>, vector<8x128xbf16>
    tpu.vector_store %arg9[%c56_119, %c512_120], %175 {strides = array<i32>} : memref<64x640xbf16, #tpu.memory_space<vmem>>, vector<8x128xbf16>,
    %c0_121 = arith.constant 0 : index
    %c0_122 = arith.constant 0 : index
    %177 = vector.load %arg9[%c0_121, %c0_122] : memref<64x640xbf16, #tpu.memory_space<vmem>>, vector<64x640xbf16>
    %c0_123 = arith.constant 0 : index
    %c0_124 = arith.constant 0 : index
    %178 = vector.load %arg3[%c0_123, %c0_124] : memref<640x256xbf16, #tpu.memory_space<vmem>>, vector<640x256xbf16>
    %cst_125 = arith.constant dense<0.000000e+00> : vector<64x256xf32>
    %179 = tpu.matmul %177, %178, %cst_125 {dimension_numbers = #tpu.dot_dimension_numbers<[1], [0], [0], [1], [0, 0, 1, 1], [], []>} : vector<64x640xbf16>, vector<640x256xbf16>, vector<64x256xf32> -> vector<64x256xf32>
    %c0_126 = arith.constant 0 : index
    %c0_127 = arith.constant 0 : index
    %180 = vector.load %arg10[%c0_126, %c0_127] : memref<64x256xf32, #tpu.memory_space<vmem>>, vector<64x256xf32>
    tpu.vector_store %arg10[%c0_126, %c0_127], %179 {strides = array<i32>} : memref<64x256xf32, #tpu.memory_space<vmem>>, vector<64x256xf32>,
    %c1 = arith.constant 1 : index
    %c0_128 = arith.constant 0 : index
    %181 = vector.load %arg6[%c1, %c0_128] : memref<4x128xf32, #tpu.memory_space<vmem>>, vector<1x128xf32>
    %c0_129 = arith.constant 0 : index
    %c0_130 = arith.constant 0 : index
    %182 = vector.load %arg10[%c0_129, %c0_130] : memref<64x256xf32, #tpu.memory_space<vmem>>, vector<8x256xf32>
    %c8_131 = arith.constant 8 : index
    %c0_132 = arith.constant 0 : index
    %183 = vector.load %arg10[%c8_131, %c0_132] : memref<64x256xf32, #tpu.memory_space<vmem>>, vector<8x256xf32>
    %184 = arith.maximumf %182, %183 : vector<8x256xf32>
    %185 = vector.extract_strided_slice %184 {offsets = [0, 0], sizes = [8, 128], strides = [1, 1]} : vector<8x256xf32> to vector<8x128xf32>
    %186 = vector.extract_strided_slice %184 {offsets = [0, 128], sizes = [8, 128], strides = [1, 1]} : vector<8x256xf32> to vector<8x128xf32>
    %187 = arith.maximumf %185, %186 : vector<8x128xf32>
    %188 = vector.broadcast %181 : vector<1x128xf32> to vector<8x128xf32>
    %189 = arith.addf %187, %188 : vector<8x128xf32>
    %cst_133 = arith.constant 0.000000e+00 : f32
    %190 = vector.broadcast %cst_133 : f32 to vector<8x128xf32>
    %191 = arith.maximumf %189, %190 : vector<8x128xf32>
    %192 = arith.truncf %191 : vector<8x128xf32> to vector<8x128xbf16>
    %c0_134 = arith.constant 0 : index
    %c0_135 = arith.constant 0 : index
    %193 = vector.load %arg11[%c0_134, %c0_135] : memref<8x512xbf16, #tpu.memory_space<vmem>>, vector<8x128xbf16>
    tpu.vector_store %arg11[%c0_134, %c0_135], %192 {strides = array<i32>} : memref<8x512xbf16, #tpu.memory_space<vmem>>, vector<8x128xbf16>,
    %c16_136 = arith.constant 16 : index
    %c0_137 = arith.constant 0 : index
    %194 = vector.load %arg10[%c16_136, %c0_137] : memref<64x256xf32, #tpu.memory_space<vmem>>, vector<8x256xf32>
    %c24_138 = arith.constant 24 : index
    %c0_139 = arith.constant 0 : index
    %195 = vector.load %arg10[%c24_138, %c0_139] : memref<64x256xf32, #tpu.memory_space<vmem>>, vector<8x256xf32>
    %196 = arith.maximumf %194, %195 : vector<8x256xf32>
    %197 = vector.extract_strided_slice %196 {offsets = [0, 0], sizes = [8, 128], strides = [1, 1]} : vector<8x256xf32> to vector<8x128xf32>
    %198 = vector.extract_strided_slice %196 {offsets = [0, 128], sizes = [8, 128], strides = [1, 1]} : vector<8x256xf32> to vector<8x128xf32>
    %199 = arith.maximumf %197, %198 : vector<8x128xf32>
    %200 = vector.broadcast %181 : vector<1x128xf32> to vector<8x128xf32>
    %201 = arith.addf %199, %200 : vector<8x128xf32>
    %cst_140 = arith.constant 0.000000e+00 : f32
    %202 = vector.broadcast %cst_140 : f32 to vector<8x128xf32>
    %203 = arith.maximumf %201, %202 : vector<8x128xf32>
    %204 = arith.truncf %203 : vector<8x128xf32> to vector<8x128xbf16>
    %c0_141 = arith.constant 0 : index
    %c128_142 = arith.constant 128 : index
    %205 = vector.load %arg11[%c0_141, %c128_142] : memref<8x512xbf16, #tpu.memory_space<vmem>>, vector<8x128xbf16>
    tpu.vector_store %arg11[%c0_141, %c128_142], %204 {strides = array<i32>} : memref<8x512xbf16, #tpu.memory_space<vmem>>, vector<8x128xbf16>,
    %c32_143 = arith.constant 32 : index
    %c0_144 = arith.constant 0 : index
    %206 = vector.load %arg10[%c32_143, %c0_144] : memref<64x256xf32, #tpu.memory_space<vmem>>, vector<8x256xf32>
    %c40_145 = arith.constant 40 : index
    %c0_146 = arith.constant 0 : index
    %207 = vector.load %arg10[%c40_145, %c0_146] : memref<64x256xf32, #tpu.memory_space<vmem>>, vector<8x256xf32>
    %208 = arith.maximumf %206, %207 : vector<8x256xf32>
    %209 = vector.extract_strided_slice %208 {offsets = [0, 0], sizes = [8, 128], strides = [1, 1]} : vector<8x256xf32> to vector<8x128xf32>
    %210 = vector.extract_strided_slice %208 {offsets = [0, 128], sizes = [8, 128], strides = [1, 1]} : vector<8x256xf32> to vector<8x128xf32>
    %211 = arith.maximumf %209, %210 : vector<8x128xf32>
    %212 = vector.broadcast %181 : vector<1x128xf32> to vector<8x128xf32>
    %213 = arith.addf %211, %212 : vector<8x128xf32>
    %cst_147 = arith.constant 0.000000e+00 : f32
    %214 = vector.broadcast %cst_147 : f32 to vector<8x128xf32>
    %215 = arith.maximumf %213, %214 : vector<8x128xf32>
    %216 = arith.truncf %215 : vector<8x128xf32> to vector<8x128xbf16>
    %c0_148 = arith.constant 0 : index
    %c256_149 = arith.constant 256 : index
    %217 = vector.load %arg11[%c0_148, %c256_149] : memref<8x512xbf16, #tpu.memory_space<vmem>>, vector<8x128xbf16>
    tpu.vector_store %arg11[%c0_148, %c256_149], %216 {strides = array<i32>} : memref<8x512xbf16, #tpu.memory_space<vmem>>, vector<8x128xbf16>,
    %c48_150 = arith.constant 48 : index
    %c0_151 = arith.constant 0 : index
    %218 = vector.load %arg10[%c48_150, %c0_151] : memref<64x256xf32, #tpu.memory_space<vmem>>, vector<8x256xf32>
    %c56_152 = arith.constant 56 : index
    %c0_153 = arith.constant 0 : index
    %219 = vector.load %arg10[%c56_152, %c0_153] : memref<64x256xf32, #tpu.memory_space<vmem>>, vector<8x256xf32>
    %220 = arith.maximumf %218, %219 : vector<8x256xf32>
    %221 = vector.extract_strided_slice %220 {offsets = [0, 0], sizes = [8, 128], strides = [1, 1]} : vector<8x256xf32> to vector<8x128xf32>
    %222 = vector.extract_strided_slice %220 {offsets = [0, 128], sizes = [8, 128], strides = [1, 1]} : vector<8x256xf32> to vector<8x128xf32>
    %223 = arith.maximumf %221, %222 : vector<8x128xf32>
    %224 = vector.broadcast %181 : vector<1x128xf32> to vector<8x128xf32>
    %225 = arith.addf %223, %224 : vector<8x128xf32>
    %cst_154 = arith.constant 0.000000e+00 : f32
    %226 = vector.broadcast %cst_154 : f32 to vector<8x128xf32>
    %227 = arith.maximumf %225, %226 : vector<8x128xf32>
    %228 = arith.truncf %227 : vector<8x128xf32> to vector<8x128xbf16>
    %c0_155 = arith.constant 0 : index
    %c384_156 = arith.constant 384 : index
    %229 = vector.load %arg11[%c0_155, %c384_156] : memref<8x512xbf16, #tpu.memory_space<vmem>>, vector<8x128xbf16>
    tpu.vector_store %arg11[%c0_155, %c384_156], %228 {strides = array<i32>} : memref<8x512xbf16, #tpu.memory_space<vmem>>, vector<8x128xbf16>,
    %c0_157 = arith.constant 0 : index
    %c0_158 = arith.constant 0 : index
    %230 = vector.load %arg11[%c0_157, %c0_158] : memref<8x512xbf16, #tpu.memory_space<vmem>>, vector<8x512xbf16>
    %c0_159 = arith.constant 0 : index
    %c0_160 = arith.constant 0 : index
    %231 = vector.load %arg4[%c0_159, %c0_160] : memref<512x128xbf16, #tpu.memory_space<vmem>>, vector<512x128xbf16>
    %cst_161 = arith.constant dense<0.000000e+00> : vector<8x128xf32>
    %232 = tpu.matmul %230, %231, %cst_161 {dimension_numbers = #tpu.dot_dimension_numbers<[1], [0], [0], [1], [0, 0, 1, 1], [], []>} : vector<8x512xbf16>, vector<512x128xbf16>, vector<8x128xf32> -> vector<8x128xf32>
    %c2 = arith.constant 2 : index
    %c0_162 = arith.constant 0 : index
    %233 = vector.load %arg6[%c2, %c0_162] : memref<4x128xf32, #tpu.memory_space<vmem>>, vector<1x128xf32>
    %234 = vector.broadcast %233 : vector<1x128xf32> to vector<8x128xf32>
    %235 = arith.addf %232, %234 : vector<8x128xf32>
    %cst_163 = arith.constant 0.000000e+00 : f32
    %236 = vector.broadcast %cst_163 : f32 to vector<8x128xf32>
    %237 = arith.maximumf %235, %236 : vector<8x128xf32>
    %238 = arith.truncf %237 : vector<8x128xf32> to vector<8x128xbf16>
    %c0_164 = arith.constant 0 : index
    %c0_165 = arith.constant 0 : index
    %239 = vector.load %arg5[%c0_164, %c0_165] : memref<128x128xbf16, #tpu.memory_space<vmem>>, vector<128x128xbf16>
    %cst_166 = arith.constant dense<0.000000e+00> : vector<8x128xf32>
    %240 = tpu.matmul %238, %239, %cst_166 {dimension_numbers = #tpu.dot_dimension_numbers<[1], [0], [0], [1], [0, 0, 1, 1], [], []>} : vector<8x128xbf16>, vector<128x128xbf16>, vector<8x128xf32> -> vector<8x128xf32>
    %c3 = arith.constant 3 : index
    %c0_167 = arith.constant 0 : index
    %241 = vector.load %arg6[%c3, %c0_167] : memref<4x128xf32, #tpu.memory_space<vmem>>, vector<1x128xf32>
    %242 = vector.broadcast %241 : vector<1x128xf32> to vector<8x128xf32>
    %243 = arith.addf %240, %242 : vector<8x128xf32>
    %244 = tpu.iota {dimensions = array<i32: 1>} : vector<8x128xi32>
    %c10_i32 = arith.constant 10 : i32
    %245 = vector.broadcast %c10_i32 : i32 to vector<8x128xi32>
    %246 = arith.cmpi slt, %244, %245 : vector<8x128xi32>
    %cst_168 = arith.constant -1.000000e+30 : f32
    %247 = vector.broadcast %cst_168 : f32 to vector<8x128xf32>
    %248 = arith.select %246, %243, %247 : vector<8x128xi1>, vector<8x128xf32>
    %cst_169 = arith.constant dense<0xFF800000> : vector<8xf32>
    %249 = vector.multi_reduction <maximumf>, %248, %cst_169 [1] : vector<8x128xf32> to vector<8xf32>
    %250 = vector.shape_cast %249 : vector<8xf32> to vector<8x1xf32>
    %251 = vector.broadcast %250 : vector<8x1xf32> to vector<8x128xf32>
    %252 = arith.subf %248, %251 : vector<8x128xf32>
    %253 = math.exp %252 : vector<8x128xf32>
    %cst_170 = arith.constant 0.000000e+00 : f32
    %254 = vector.broadcast %cst_170 : f32 to vector<8x128xf32>
    %255 = arith.select %246, %253, %254 : vector<8x128xi1>, vector<8x128xf32>
    %cst_171 = arith.constant dense<0.000000e+00> : vector<8xf32>
    %256 = vector.multi_reduction <add>, %255, %cst_171 [1] : vector<8x128xf32> to vector<8xf32>
    %257 = vector.shape_cast %256 : vector<8xf32> to vector<8x1xf32>
    %258 = tpu.reciprocal %257 {approx = true} : vector<8x1xf32> -> vector<8x1xf32>
    %259 = vector.broadcast %258 : vector<8x1xf32> to vector<8x128xf32>
    %260 = arith.mulf %255, %259 : vector<8x128xf32>
    %c0_172 = arith.constant 0 : index
    %c0_173 = arith.constant 0 : index
    %261 = vector.load %arg7[%c0_172, %c0_173] : memref<8x128xf32, #tpu.memory_space<vmem>>, vector<8x128xf32>
    tpu.vector_store %arg7[%c0_172, %c0_173], %260 {strides = array<i32>} : memref<8x128xf32, #tpu.memory_space<vmem>>, vector<8x128xf32>,
    return
  }
  func.func @transform_0(%arg0: i32) -> (i32, i32) {
    %c0_i32 = arith.constant 0 : i32
    %c0_i32_0 = arith.constant 0 : i32
    return %arg0, %c0_i32 : i32, i32
  }
  func.func @transform_1(%arg0: i32) -> (i32, i32) {
    %c0_i32 = arith.constant 0 : i32
    %c0_i32_0 = arith.constant 0 : i32
    %c0_i32_1 = arith.constant 0 : i32
    return %c0_i32, %c0_i32_0 : i32, i32
  }
  func.func @transform_2(%arg0: i32) -> (i32, i32) {
    %c0_i32 = arith.constant 0 : i32
    %c0_i32_0 = arith.constant 0 : i32
    %c0_i32_1 = arith.constant 0 : i32
    return %c0_i32, %c0_i32_0 : i32, i32
  }
  func.func @transform_3(%arg0: i32) -> (i32, i32) {
    %c0_i32 = arith.constant 0 : i32
    %c0_i32_0 = arith.constant 0 : i32
    %c0_i32_1 = arith.constant 0 : i32
    return %c0_i32, %c0_i32_0 : i32, i32
  }
  func.func @transform_4(%arg0: i32) -> (i32, i32) {
    %c0_i32 = arith.constant 0 : i32
    %c0_i32_0 = arith.constant 0 : i32
    %c0_i32_1 = arith.constant 0 : i32
    return %c0_i32, %c0_i32_0 : i32, i32
  }
  func.func @transform_5(%arg0: i32) -> (i32, i32) {
    %c0_i32 = arith.constant 0 : i32
    %c0_i32_0 = arith.constant 0 : i32
    %c0_i32_1 = arith.constant 0 : i32
    return %c0_i32, %c0_i32_0 : i32, i32
  }
  func.func @transform_6(%arg0: i32) -> (i32, i32) {
    %c0_i32 = arith.constant 0 : i32
    %c0_i32_0 = arith.constant 0 : i32
    return %arg0, %c0_i32 : i32, i32
  }
}

</mosaic_0001>

<llo_original>
// kernel: hao_forward.1
$region0: #{hao_forward.1}
  #allocation0 [shape = 'u32[]', space=smem, size = 0x4, offset = 0x4, fixed_abs, tag = 'smem constant byte address 0x4 - core index']
  #allocation1 [shape = 'u32[144,128]{1,0:T(1,128)}', space=vmem, size = 0x12000, scoped, tag = 'internal scratch']
  #allocation2 [shape = 'f32[192,256]{1,0:T(8,128)}', space=vmem, size = 0x30000, scoped, tag = 'scratch operand']
  #allocation3 [shape = 'bf16[64,640]{1,0:T(16,128)(2,1)}', space=vmem, size = 0x14000, scoped, tag = 'scratch operand']
  #allocation4 [shape = 'f32[64,256]{1,0:T(8,128)}', space=vmem, size = 0x10000, scoped, tag = 'scratch operand']
  #allocation5 [shape = 'bf16[8,512]{1,0:T(8,128)(2,1)}', space=vmem, size = 0x2000, scoped, tag = 'scratch operand']
  %s0 = inlined_call_operand.vmem [shape: bf16[192,256], index: 0, kind: input, shape index: {}]
  %s1 = inlined_call_operand.vmem [shape: bf16[256,256], index: 1, kind: input, shape index: {}]
  %s2 = inlined_call_operand.vmem [shape: bf16[640,256], index: 2, kind: input, shape index: {}]
  %s3 = inlined_call_operand.vmem [shape: bf16[512,128], index: 3, kind: input, shape index: {}]
  %s4 = inlined_call_operand.vmem [shape: bf16[128,128], index: 4, kind: input, shape index: {}]
  %s5 = inlined_call_operand.vmem [shape: f32[4,128], index: 5, kind: input, shape index: {}]
  %s6 = inlined_call_operand.vmem [shape: f32[8,128], index: 6, kind: output, shape index: {}]
  %s7 = sld [smem:[#allocation0]]
  $region34: #{hao_forward.1} parent=0
    _
  %s9 = ssub.s32 1, %s7
  %s10 = scalar_select 0, %s9, %s7
  // Predicated region
  $region2: #{hao_forward.1} parent=0 // pred_check
    _
  $region3: #{hao_forward.1} parent=0 // pred_check_branch
    %12 = sbr.rel (0) target = $region5
  $region4: #{hao_forward.1} parent=0 // pred_region
    _
  $region5: #{hao_forward.1} parent=0 // pred_fallthru
    _
  // Predicated region
  $region6: #{hao_forward.1} parent=0 // pred_check
    _
  $region7: #{hao_forward.1} parent=0 // pred_check_branch
    %14 = sbr.rel (0) target = $region9
  $region8: #{hao_forward.1} parent=0 // pred_region
    _
  $region9: #{hao_forward.1} parent=0 // pred_fallthru
    _
  // Predicated region
  $region10: #{hao_forward.1} parent=0 // pred_check
    _
  $region11: #{hao_forward.1} parent=0 // pred_check_branch
    %16 = sbr.rel (0) target = $region13
  $region12: #{hao_forward.1} parent=0 // pred_region
    _
  $region13: #{hao_forward.1} parent=0 // pred_fallthru
    _
  // Predicated region
  $region14: #{hao_forward.1} parent=0 // pred_check
    _
  $region15: #{hao_forward.1} parent=0 // pred_check_branch
    %18 = sbr.rel (0) target = $region17
  $region16: #{hao_forward.1} parent=0 // pred_region
    _
  $region17: #{hao_forward.1} parent=0 // pred_fallthru
    _
  // Predicated region
  $region18: #{hao_forward.1} parent=0 // pred_check
    _
  $region19: #{hao_forward.1} parent=0 // pred_check_branch
    %20 = sbr.rel (0) target = $region21
  $region20: #{hao_forward.1} parent=0 // pred_region
    _
  $region21: #{hao_forward.1} parent=0 // pred_fallthru
    _
  // Predicated region
  $region22: #{hao_forward.1} parent=0 // pred_check
    _
  $region23: #{hao_forward.1} parent=0 // pred_check_branch
    %22 = sbr.rel (0) target = $region25
  $region24: #{hao_forward.1} parent=0 // pred_region
    _
  $region25: #{hao_forward.1} parent=0 // pred_fallthru
    _
  %v24 = vld [vmem:[%s0] sm:$0xff]
  %v25 = vld [vmem:[%s0 + $0x8] sm:$0xff]
  %v26 = vld [vmem:[%s0 + $0x10] sm:$0xff]
  %v27 = vld [vmem:[%s0 + $0x18] sm:$0xff]
  %v28 = vld [vmem:[%s0 + $0x20] sm:$0xff]
  %v29 = vld [vmem:[%s0 + $0x28] sm:$0xff]
  %v30 = vld [vmem:[%s0 + $0x30] sm:$0xff]
  %v31 = vld [vmem:[%s0 + $0x38] sm:$0xff]
  %v32 = vld [vmem:[%s0 + $0x40] sm:$0xff]
  %v33 = vld [vmem:[%s0 + $0x48] sm:$0xff]
  %v34 = vld [vmem:[%s0 + $0x50] sm:$0xff]
  %v35 = vld [vmem:[%s0 + $0x58] sm:$0xff]
  %v36 = vld [vmem:[%s0 + $0x60] sm:$0xff]
  %v37 = vld [vmem:[%s0 + $0x68] sm:$0xff]
  %v38 = vld [vmem:[%s0 + $0x70] sm:$0xff]
  %v39 = vld [vmem:[%s0 + $0x78] sm:$0xff]
  %v40 = vld [vmem:[%s0 + $0x80] sm:$0xff]
  %v41 = vld [vmem:[%s0 + $0x88] sm:$0xff]
  %v42 = vld [vmem:[%s0 + $0x90] sm:$0xff]
  %v43 = vld [vmem:[%s0 + $0x98] sm:$0xff]
  %v44 = vld [vmem:[%s0 + $0xa0] sm:$0xff]
  %v45 = vld [vmem:[%s0 + $0xa8] sm:$0xff]
  %v46 = vld [vmem:[%s0 + $0xb0] sm:$0xff]
  %v47 = vld [vmem:[%s0 + $0xb8] sm:$0xff]
  %v48 = vld [vmem:[%s1] sm:$0xff]
  %v49 = vld [vmem:[%s1 + $0x8] sm:$0xff]
  %v50 = vld [vmem:[%s1 + $0x10] sm:$0xff]
  %v51 = vld [vmem:[%s1 + $0x18] sm:$0xff]
  %v52 = vld [vmem:[%s1 + $0x20] sm:$0xff]
  %v53 = vld [vmem:[%s1 + $0x28] sm:$0xff]
  %v54 = vld [vmem:[%s1 + $0x30] sm:$0xff]
  %v55 = vld [vmem:[%s1 + $0x38] sm:$0xff]
  %v56 = vld [vmem:[%s1 + $0x40] sm:$0xff]
  %v57 = vld [vmem:[%s1 + $0x48] sm:$0xff]
  %v58 = vld [vmem:[%s1 + $0x50] sm:$0xff]
  %v59 = vld [vmem:[%s1 + $0x58] sm:$0xff]
  %v60 = vld [vmem:[%s1 + $0x60] sm:$0xff]
  %v61 = vld [vmem:[%s1 + $0x68] sm:$0xff]
  %v62 = vld [vmem:[%s1 + $0x70] sm:$0xff]
  %v63 = vld [vmem:[%s1 + $0x78] sm:$0xff]
  %v64 = vld [vmem:[%s1 + $0x80] sm:$0xff]
  %v65 = vld [vmem:[%s1 + $0x88] sm:$0xff]
  %v66 = vld [vmem:[%s1 + $0x90] sm:$0xff]
  %v67 = vld [vmem:[%s1 + $0x98] sm:$0xff]
  %v68 = vld [vmem:[%s1 + $0xa0] sm:$0xff]
  %v69 = vld [vmem:[%s1 + $0xa8] sm:$0xff]
  %v70 = vld [vmem:[%s1 + $0xb0] sm:$0xff]
  %v71 = vld [vmem:[%s1 + $0xb8] sm:$0xff]
  %v72 = vld [vmem:[%s1 + $0xc0] sm:$0xff]
  %v73 = vld [vmem:[%s1 + $0xc8] sm:$0xff]
  %v74 = vld [vmem:[%s1 + $0xd0] sm:$0xff]
  %v75 = vld [vmem:[%s1 + $0xd8] sm:$0xff]
  %v76 = vld [vmem:[%s1 + $0xe0] sm:$0xff]
  %v77 = vld [vmem:[%s1 + $0xe8] sm:$0xff]
  %v78 = vld [vmem:[%s1 + $0xf0] sm:$0xff]
  %v79 = vld [vmem:[%s1 + $0xf8] sm:$0xff]
  %v104 = vunpack.c.l.b16 %v24
  %v105 = vunpack.c.h.b16 %v24
  %v106 = vunpack.c.l.b16 %v25
  %v107 = vunpack.c.h.b16 %v25
  %v108 = vunpack.c.l.b16 %v26
  %v109 = vunpack.c.h.b16 %v26
  %v110 = vunpack.c.l.b16 %v27
  %v111 = vunpack.c.h.b16 %v27
  %v112 = vunpack.c.l.b16 %v28
  %v113 = vunpack.c.h.b16 %v28
  %v114 = vunpack.c.l.b16 %v29
  %v115 = vunpack.c.h.b16 %v29
  %v116 = vunpack.c.l.b16 %v30
  %v117 = vunpack.c.h.b16 %v30
  %v118 = vunpack.c.l.b16 %v31
  %v119 = vunpack.c.h.b16 %v31
  %v120 = vunpack.c.l.b16 %v32
  %v121 = vunpack.c.h.b16 %v32
  %v122 = vunpack.c.l.b16 %v33
  %v123 = vunpack.c.h.b16 %v33
  %v124 = vunpack.c.l.b16 %v34
  %v125 = vunpack.c.h.b16 %v34
  %v126 = vunpack.c.l.b16 %v35
  %v127 = vunpack.c.h.b16 %v35
  %v128 = vunpack.c.l.b16 %v36
  %v129 = vunpack.c.h.b16 %v36
  %v130 = vunpack.c.l.b16 %v37
  %v131 = vunpack.c.h.b16 %v37
  %v132 = vunpack.c.l.b16 %v38
  %v133 = vunpack.c.h.b16 %v38
  %v134 = vunpack.c.l.b16 %v39
  %v135 = vunpack.c.h.b16 %v39
  %v136 = vunpack.c.l.b16 %v40
  %v137 = vunpack.c.h.b16 %v40
  %v138 = vunpack.c.l.b16 %v41
  %v139 = vunpack.c.h.b16 %v41
  %v140 = vunpack.c.l.b16 %v42
  %v141 = vunpack.c.h.b16 %v42
  %v142 = vunpack.c.l.b16 %v43
  %v143 = vunpack.c.h.b16 %v43
  %v144 = vunpack.c.l.b16 %v44
  %v145 = vunpack.c.h.b16 %v44
  %v146 = vunpack.c.l.b16 %v45
  %v147 = vunpack.c.h.b16 %v45
  %v148 = vunpack.c.l.b16 %v46
  %v149 = vunpack.c.h.b16 %v46
  %v150 = vunpack.c.l.b16 %v47
  %v151 = vunpack.c.h.b16 %v47
  %v152 = vpack.c.b16 %v106, %v104
  %v153 = vpack.c.b16 %v107, %v105
  %v154 = vpack.c.b16 %v110, %v108
  %v155 = vpack.c.b16 %v111, %v109
  %v156 = vpack.c.b16 %v114, %v112
  %v157 = vpack.c.b16 %v115, %v113
  %v158 = vpack.c.b16 %v118, %v116
  %v159 = vpack.c.b16 %v119, %v117
  %v160 = vpack.c.b16 %v122, %v120
  %v161 = vpack.c.b16 %v123, %v121
  %v162 = vpack.c.b16 %v126, %v124
  %v163 = vpack.c.b16 %v127, %v125
  %v164 = vpack.c.b16 %v130, %v128
  %v165 = vpack.c.b16 %v131, %v129
  %v166 = vpack.c.b16 %v134, %v132
  %v167 = vpack.c.b16 %v135, %v133
  %v168 = vpack.c.b16 %v138, %v136
  %v169 = vpack.c.b16 %v139, %v137
  %v170 = vpack.c.b16 %v142, %v140
  %v171 = vpack.c.b16 %v143, %v141
  %v172 = vpack.c.b16 %v146, %v144
  %v173 = vpack.c.b16 %v147, %v145
  %v174 = vpack.c.b16 %v150, %v148
  %v175 = vpack.c.b16 %v151, %v149
  %v232 = vunpack.c.l.b16 %v48
  %v233 = vunpack.c.h.b16 %v48
  %v234 = vunpack.c.l.b16 %v49
  %v235 = vunpack.c.h.b16 %v49
  %v236 = vunpack.c.l.b16 %v50
  %v237 = vunpack.c.h.b16 %v50
  %v238 = vunpack.c.l.b16 %v51
  %v239 = vunpack.c.h.b16 %v51
  %v240 = vunpack.c.l.b16 %v52
  %v241 = vunpack.c.h.b16 %v52
  %v242 = vunpack.c.l.b16 %v53
  %v243 = vunpack.c.h.b16 %v53
  %v244 = vunpack.c.l.b16 %v54
  %v245 = vunpack.c.h.b16 %v54
  %v246 = vunpack.c.l.b16 %v55
  %v247 = vunpack.c.h.b16 %v55
  %v248 = vunpack.c.l.b16 %v56
  %v249 = vunpack.c.h.b16 %v56
  %v250 = vunpack.c.l.b16 %v57
  %v251 = vunpack.c.h.b16 %v57
  %v252 = vunpack.c.l.b16 %v58
  %v253 = vunpack.c.h.b16 %v58
  %v254 = vunpack.c.l.b16 %v59
  %v255 = vunpack.c.h.b16 %v59
  %v256 = vunpack.c.l.b16 %v60
  %v257 = vunpack.c.h.b16 %v60
  %v258 = vunpack.c.l.b16 %v61
  %v259 = vunpack.c.h.b16 %v61
  %v260 = vunpack.c.l.b16 %v62
  %v261 = vunpack.c.h.b16 %v62
  %v262 = vunpack.c.l.b16 %v63
  %v263 = vunpack.c.h.b16 %v63
  %v264 = vunpack.c.l.b16 %v64
  %v265 = vunpack.c.h.b16 %v64
  %v266 = vunpack.c.l.b16 %v65
  %v267 = vunpack.c.h.b16 %v65
  %v268 = vunpack.c.l.b16 %v66
  %v269 = vunpack.c.h.b16 %v66
  %v270 = vunpack.c.l.b16 %v67
  %v271 = vunpack.c.h.b16 %v67
  %v272 = vunpack.c.l.b16 %v68
  %v273 = vunpack.c.h.b16 %v68
  %v274 = vunpack.c.l.b16 %v69
  %v275 = vunpack.c.h.b16 %v69
  %v276 = vunpack.c.l.b16 %v70
  %v277 = vunpack.c.h.b16 %v70
  %v278 = vunpack.c.l.b16 %v71
  %v279 = vunpack.c.h.b16 %v71
  %v280 = vunpack.c.l.b16 %v72
  %v281 = vunpack.c.h.b16 %v72
  %v282 = vunpack.c.l.b16 %v73
  %v283 = vunpack.c.h.b16 %v73
  %v284 = vunpack.c.l.b16 %v74
  %v285 = vunpack.c.h.b16 %v74
  %v286 = vunpack.c.l.b16 %v75
  %v287 = vunpack.c.h.b16 %v75
  %v288 = vunpack.c.l.b16 %v76
  %v289 = vunpack.c.h.b16 %v76
  %v290 = vunpack.c.l.b16 %v77
  %v291 = vunpack.c.h.b16 %v77
  %v292 = vunpack.c.l.b16 %v78
  %v293 = vunpack.c.h.b16 %v78
  %v294 = vunpack.c.l.b16 %v79
  %v295 = vunpack.c.h.b16 %v79
  %v296 = vpack.c.b16 %v234, %v232
  %v297 = vpack.c.b16 %v235, %v233
  %v298 = vpack.c.b16 %v238, %v236
  %v299 = vpack.c.b16 %v239, %v237
  %v300 = vpack.c.b16 %v242, %v240
  %v301 = vpack.c.b16 %v243, %v241
  %v302 = vpack.c.b16 %v246, %v244
  %v303 = vpack.c.b16 %v247, %v245
  %v304 = vpack.c.b16 %v250, %v248
  %v305 = vpack.c.b16 %v251, %v249
  %v306 = vpack.c.b16 %v254, %v252
  %v307 = vpack.c.b16 %v255, %v253
  %v308 = vpack.c.b16 %v258, %v256
  %v309 = vpack.c.b16 %v259, %v257
  %v310 = vpack.c.b16 %v262, %v260
  %v311 = vpack.c.b16 %v263, %v261
  %v312 = vpack.c.b16 %v266, %v264
  %v313 = vpack.c.b16 %v267, %v265
  %v314 = vpack.c.b16 %v270, %v268
  %v315 = vpack.c.b16 %v271, %v269
  %v316 = vpack.c.b16 %v274, %v272
  %v317 = vpack.c.b16 %v275, %v273
  %v318 = vpack.c.b16 %v278, %v276
  %v319 = vpack.c.b16 %v279, %v277
  %v320 = vpack.c.b16 %v282, %v280
  %v321 = vpack.c.b16 %v283, %v281
  %v322 = vpack.c.b16 %v286, %v284
  %v323 = vpack.c.b16 %v287, %v285
  %v324 = vpack.c.b16 %v290, %v288
  %v325 = vpack.c.b16 %v291, %v289
  %v326 = vpack.c.b16 %v294, %v292
  %v327 = vpack.c.b16 %v295, %v293
  %360 = vmatprep.subr.bf16.mxu0 %v297
  %361 = vmatpush1.bf16.msra.mxu0 %v296
  %362 = vmatprep.subr.bf16.mxu0 %v299
  %363 = vmatpush1.bf16.msra.mxu0 %v298
  %364 = vmatprep.subr.bf16.mxu0 %v301
  %365 = vmatpush1.bf16.msra.mxu0 %v300
  %366 = vmatprep.subr.bf16.mxu0 %v303
  %367 = vmatpush1.bf16.msra.mxu0 %v302
  %368 = vmatprep.subr.bf16.mxu0 %v305
  %369 = vmatpush1.bf16.msra.mxu0 %v304
  %370 = vmatprep.subr.bf16.mxu0 %v307
  %371 = vmatpush1.bf16.msra.mxu0 %v306
  %372 = vmatprep.subr.bf16.mxu0 %v309
  %373 = vmatpush1.bf16.msra.mxu0 %v308
  %374 = vmatprep.subr.bf16.mxu0 %v311
  %375 = vmatpush1.bf16.msra.mxu0 %v310
  %376 = vmatprep.subr.bf16.mxu0 %v313
  %377 = vmatpush1.bf16.msra.mxu0 %v312
  %378 = vmatprep.subr.bf16.mxu0 %v315
  %379 = vmatpush1.bf16.msra.mxu0 %v314
  %380 = vmatprep.subr.bf16.mxu0 %v317
  %381 = vmatpush1.bf16.msra.mxu0 %v316
  %382 = vmatprep.subr.bf16.mxu0 %v319
  %383 = vmatpush1.bf16.msra.mxu0 %v318
  %384 = vmatprep.subr.bf16.mxu0 %v321
  %385 = vmatpush1.bf16.msra.mxu0 %v320
  %386 = vmatprep.subr.bf16.mxu0 %v323
  %387 = vmatpush1.bf16.msra.mxu0 %v322
  %388 = vmatprep.subr.bf16.mxu0 %v325
  %389 = vmatpush1.bf16.msra.mxu0 %v324
  %390 = vmatprep.subr.bf16.mxu0 %v327
  %391 = vmatpush1.bf16.msra.mxu0 %v326
  %392 = vmatprep.mubr.bf16.mxu0 %v153
  %393 = vmatmul.mubr.bf16.gmra.mrb[0].mxu0 %v152
  %v394 = vpop.f32.mrb[0].mxu0
  %v395 = vadd.f32 0.0, %v394
  %v396 = vpop.f32.mrb[0].mxu0
  %v397 = vadd.f32 0.0, %v396
  %v398 = vpop.f32.mrb[0].mxu0
  %v399 = vadd.f32 0.0, %v398
  %v400 = vpop.f32.mrb[0].mxu0
  %v401 = vadd.f32 0.0, %v400
  %402 = vmatprep.mubr.bf16.mxu0 %v155
  %403 = vmatmul.mubr.bf16.gmra.mrb[0].mxu0 %v154
  %v404 = vpop.f32.mrb[0].mxu0
  %v405 = vadd.f32 0.0, %v404
  %v406 = vpop.f32.mrb[0].mxu0
  %v407 = vadd.f32 0.0, %v406
  %v408 = vpop.f32.mrb[0].mxu0
  %v409 = vadd.f32 0.0, %v408
  %v410 = vpop.f32.mrb[0].mxu0
  %v411 = vadd.f32 0.0, %v410
  %412 = vmatprep.mubr.bf16.mxu0 %v157
  %413 = vmatmul.mubr.bf16.gmra.mrb[0].mxu0 %v156
  %v414 = vpop.f32.mrb[0].mxu0
  %v415 = vadd.f32 0.0, %v414
  %v416 = vpop.f32.mrb[0].mxu0
  %v417 = vadd.f32 0.0, %v416
  %v418 = vpop.f32.mrb[0].mxu0
  %v419 = vadd.f32 0.0, %v418
  %v420 = vpop.f32.mrb[0].mxu0
  %v421 = vadd.f32 0.0, %v420
  %422 = vmatprep.mubr.bf16.mxu0 %v159
  %423 = vmatmul.mubr.bf16.gmra.mrb[0].mxu0 %v158
  %v424 = vpop.f32.mrb[0].mxu0
  %v425 = vadd.f32 0.0, %v424
  %v426 = vpop.f32.mrb[0].mxu0
  %v427 = vadd.f32 0.0, %v426
  %v428 = vpop.f32.mrb[0].mxu0
  %v429 = vadd.f32 0.0, %v428
  %v430 = vpop.f32.mrb[0].mxu0
  %v431 = vadd.f32 0.0, %v430
  %432 = vmatprep.mubr.bf16.mxu0 %v161
  %433 = vmatmul.mubr.bf16.gmra.mrb[0].mxu0 %v160
  %v434 = vpop.f32.mrb[0].mxu0
  %v435 = vadd.f32 0.0, %v434
  %v436 = vpop.f32.mrb[0].mxu0
  %v437 = vadd.f32 0.0, %v436
  %v438 = vpop.f32.mrb[0].mxu0
  %v439 = vadd.f32 0.0, %v438
  %v440 = vpop.f32.mrb[0].mxu0
  %v441 = vadd.f32 0.0, %v440
  %442 = vmatprep.mubr.bf16.mxu0 %v163
  %443 = vmatmul.mubr.bf16.gmra.mrb[0].mxu0 %v162
  %v444 = vpop.f32.mrb[0].mxu0
  %v445 = vadd.f32 0.0, %v444
  %v446 = vpop.f32.mrb[0].mxu0
  %v447 = vadd.f32 0.0, %v446
  %v448 = vpop.f32.mrb[0].mxu0
  %v449 = vadd.f32 0.0, %v448
  %v450 = vpop.f32.mrb[0].mxu0
  %v451 = vadd.f32 0.0, %v450
  %452 = vmatprep.mubr.bf16.mxu0 %v165
  %453 = vmatmul.mubr.bf16.gmra.mrb[0].mxu0 %v164
  %v454 = vpop.f32.mrb[0].mxu0
  %v455 = vadd.f32 0.0, %v454
  %v456 = vpop.f32.mrb[0].mxu0
  %v457 = vadd.f32 0.0, %v456
  %v458 = vpop.f32.mrb[0].mxu0
  %v459 = vadd.f32 0.0, %v458
  %v460 = vpop.f32.mrb[0].mxu0
  %v461 = vadd.f32 0.0, %v460
  %462 = vmatprep.mubr.bf16.mxu0 %v167
  %463 = vmatmul.mubr.bf16.gmra.mrb[0].mxu0 %v166
  %v464 = vpop.f32.mrb[0].mxu0
  %v465 = vadd.f32 0.0, %v464
  %v466 = vpop.f32.mrb[0].mxu0
  %v467 = vadd.f32 0.0, %v466
  %v468 = vpop.f32.mrb[0].mxu0
  %v469 = vadd.f32 0.0, %v468
  %v470 = vpop.f32.mrb[0].mxu0
  %v471 = vadd.f32 0.0, %v470
  %472 = vmatprep.mubr.bf16.mxu0 %v169
  %473 = vmatmul.mubr.bf16.gmra.mrb[0].mxu0 %v168
  %v474 = vpop.f32.mrb[0].mxu0
  %v475 = vadd.f32 0.0, %v474
  %v476 = vpop.f32.mrb[0].mxu0
  %v477 = vadd.f32 0.0, %v476
  %v478 = vpop.f32.mrb[0].mxu0
  %v479 = vadd.f32 0.0, %v478
  %v480 = vpop.f32.mrb[0].mxu0
  %v481 = vadd.f32 0.0, %v480
  %482 = vmatprep.mubr.bf16.mxu0 %v171
  %483 = vmatmul.mubr.bf16.gmra.mrb[0].mxu0 %v170
  %v484 = vpop.f32.mrb[0].mxu0
  %v485 = vadd.f32 0.0, %v484
  %v486 = vpop.f32.mrb[0].mxu0
  %v487 = vadd.f32 0.0, %v486
  %v488 = vpop.f32.mrb[0].mxu0
  %v489 = vadd.f32 0.0, %v488
  %v490 = vpop.f32.mrb[0].mxu0
  %v491 = vadd.f32 0.0, %v490
  %492 = vmatprep.mubr.bf16.mxu0 %v173
  %493 = vmatmul.mubr.bf16.gmra.mrb[0].mxu0 %v172
  %v494 = vpop.f32.mrb[0].mxu0
  %v495 = vadd.f32 0.0, %v494
  %v496 = vpop.f32.mrb[0].mxu0
  %v497 = vadd.f32 0.0, %v496
  %v498 = vpop.f32.mrb[0].mxu0
  %v499 = vadd.f32 0.0, %v498
  %v500 = vpop.f32.mrb[0].mxu0
  %v501 = vadd.f32 0.0, %v500
  %502 = vmatprep.mubr.bf16.mxu0 %v175
  %503 = vmatmul.mubr.bf16.gmra.mrb[0].mxu0 %v174
  %v504 = vpop.f32.mrb[0].mxu0
  %v505 = vadd.f32 0.0, %v504
  %v506 = vpop.f32.mrb[0].mxu0
  %v507 = vadd.f32 0.0, %v506
  %v508 = vpop.f32.mrb[0].mxu0
  %v509 = vadd.f32 0.0, %v508
  %v510 = vpop.f32.mrb[0].mxu0
  %v511 = vadd.f32 0.0, %v510
  %512 = vdwg.mxu0
  %513 = vst [vmem:[#allocation2] sm:$0xff] %v395
  %514 = vst [vmem:[#allocation2 + $0x8] sm:$0xff] %v397
  %515 = vst [vmem:[#allocation2 + $0x10] sm:$0xff] %v399
  %516 = vst [vmem:[#allocation2 + $0x18] sm:$0xff] %v401
  %517 = vst [vmem:[#allocation2 + $0x20] sm:$0xff] %v405
  %518 = vst [vmem:[#allocation2 + $0x28] sm:$0xff] %v407
  %519 = vst [vmem:[#allocation2 + $0x30] sm:$0xff] %v409
  %520 = vst [vmem:[#allocation2 + $0x38] sm:$0xff] %v411
  %521 = vst [vmem:[#allocation2 + $0x40] sm:$0xff] %v415
  %522 = vst [vmem:[#allocation2 + $0x48] sm:$0xff] %v417
  %523 = vst [vmem:[#allocation2 + $0x50] sm:$0xff] %v419
  %524 = vst [vmem:[#allocation2 + $0x58] sm:$0xff] %v421
  %525 = vst [vmem:[#allocation2 + $0x60] sm:$0xff] %v425
  %526 = vst [vmem:[#allocation2 + $0x68] sm:$0xff] %v427
  %527 = vst [vmem:[#allocation2 + $0x70] sm:$0xff] %v429
  %528 = vst [vmem:[#allocation2 + $0x78] sm:$0xff] %v431
  %529 = vst [vmem:[#allocation2 + $0x80] sm:$0xff] %v435
  %530 = vst [vmem:[#allocation2 + $0x88] sm:$0xff] %v437
  %531 = vst [vmem:[#allocation2 + $0x90] sm:$0xff] %v439
  %532 = vst [vmem:[#allocation2 + $0x98] sm:$0xff] %v441
  %533 = vst [vmem:[#allocation2 + $0xa0] sm:$0xff] %v445
  %534 = vst [vmem:[#allocation2 + $0xa8] sm:$0xff] %v447
  %535 = vst [vmem:[#allocation2 + $0xb0] sm:$0xff] %v449
  %536 = vst [vmem:[#allocation2 + $0xb8] sm:$0xff] %v451
  %537 = vst [vmem:[#allocation2 + $0xc0] sm:$0xff] %v455
  %538 = vst [vmem:[#allocation2 + $0xc8] sm:$0xff] %v457
  %539 = vst [vmem:[#allocation2 + $0xd0] sm:$0xff] %v459
  %540 = vst [vmem:[#allocation2 + $0xd8] sm:$0xff] %v461
  %541 = vst [vmem:[#allocation2 + $0xe0] sm:$0xff] %v465
  %542 = vst [vmem:[#allocation2 + $0xe8] sm:$0xff] %v467
  %543 = vst [vmem:[#allocation2 + $0xf0] sm:$0xff] %v469
  %544 = vst [vmem:[#allocation2 + $0xf8] sm:$0xff] %v471
  %545 = vst [vmem:[#allocation2 + $0x100] sm:$0xff] %v475
  %546 = vst [vmem:[#allocation2 + $0x108] sm:$0xff] %v477
  %547 = vst [vmem:[#allocation2 + $0x110] sm:$0xff] %v479
  %548 = vst [vmem:[#allocation2 + $0x118] sm:$0xff] %v481
  %549 = vst [vmem:[#allocation2 + $0x120] sm:$0xff] %v485
  %550 = vst [vmem:[#allocation2 + $0x128] sm:$0xff] %v487
  %551 = vst [vmem:[#allocation2 + $0x130] sm:$0xff] %v489
  %552 = vst [vmem:[#allocation2 + $0x138] sm:$0xff] %v491
  %553 = vst [vmem:[#allocation2 + $0x140] sm:$0xff] %v495
  %554 = vst [vmem:[#allocation2 + $0x148] sm:$0xff] %v497
  %555 = vst [vmem:[#allocation2 + $0x150] sm:$0xff] %v499
  %556 = vst [vmem:[#allocation2 + $0x158] sm:$0xff] %v501
  %557 = vst [vmem:[#allocation2 + $0x160] sm:$0xff] %v505
  %558 = vst [vmem:[#allocation2 + $0x168] sm:$0xff] %v507
  %559 = vst [vmem:[#allocation2 + $0x170] sm:$0xff] %v509
  %560 = vst [vmem:[#allocation2 + $0x178] sm:$0xff] %v511
  %v561 = vld [vmem:[%s5] sm:$0x1]
  %v562 = vld [vmem:[#allocation2] sm:$0xff]
  %v563 = vld [vmem:[#allocation2 + $0x8] sm:$0xff]
  %v564 = vld [vmem:[#allocation2 + $0x10] sm:$0xff]
  %v565 = vld [vmem:[#allocation2 + $0x18] sm:$0xff]
  %v566 = vmax.f32 %v562, %v564
  %v567 = vmax.f32 %v563, %v565
  %v568 = vmax.f32 %v566, %v567
  %v569 = vlaneseq
  %v570 = vshrl.u32 %v569, 7
  %v571 = vsub.s32 0, %v570
  %v572 = vrot.slane %v561, %v571
  %v573 = vadd.f32 %v568, %v572
  %v574 = vmax.f32 %v573, 0.0
  %v575 = vpack.c.bf16 %v574, %v574
  %576 = vst [vmem:[#allocation3] sm:$0xf] %v575
  %v577 = vld [vmem:[#allocation2 + $0x20] sm:$0xff]
  %v578 = vld [vmem:[#allocation2 + $0x28] sm:$0xff]
  %v579 = vld [vmem:[#allocation2 + $0x30] sm:$0xff]
  %v580 = vld [vmem:[#allocation2 + $0x38] sm:$0xff]
  %v581 = vmax.f32 %v577, %v579
  %v582 = vmax.f32 %v578, %v580
  %v583 = vmax.f32 %v581, %v582
  %v584 = vadd.f32 %v583, %v572
  %v585 = vmax.f32 %v584, 0.0
  %v586 = vpack.c.bf16 %v585, %v585
  %v588 = vrot.slane %v586, 4
  %590 = vst [vmem:[#allocation3] sm:$0xf0] %v588
  %591 = vst [vmem:[#allocation3 + $0x8] sm:$0xf] %v586
  %v592 = vld [vmem:[#allocation2 + $0x40] sm:$0xff]
  %v593 = vld [vmem:[#allocation2 + $0x48] sm:$0xff]
  %v594 = vld [vmem:[#allocation2 + $0x50] sm:$0xff]
  %v595 = vld [vmem:[#allocation2 + $0x58] sm:$0xff]
  %v596 = vmax.f32 %v592, %v594
  %v597 = vmax.f32 %v593, %v595
  %v598 = vmax.f32 %v596, %v597
  %v599 = vadd.f32 %v598, %v572
  %v600 = vmax.f32 %v599, 0.0
  %v601 = vpack.c.bf16 %v600, %v600
  %602 = vst [vmem:[#allocation3 + $0x28] sm:$0xf] %v601
  %v604 = vrot.slane %v601, 4
  %606 = vst [vmem:[#allocation3 + $0x8] sm:$0xf0] %v604
  %607 = vst [vmem:[#allocation3 + $0x10] sm:$0xf] %v601
  %v608 = vld [vmem:[#allocation2 + $0x60] sm:$0xff]
  %v609 = vld [vmem:[#allocation2 + $0x68] sm:$0xff]
  %v610 = vld [vmem:[#allocation2 + $0x70] sm:$0xff]
  %v611 = vld [vmem:[#allocation2 + $0x78] sm:$0xff]
  %v612 = vmax.f32 %v608, %v610
  %v613 = vmax.f32 %v609, %v611
  %v614 = vmax.f32 %v612, %v613
  %v615 = vadd.f32 %v614, %v572
  %v616 = vmax.f32 %v615, 0.0
  %v617 = vpack.c.bf16 %v616, %v616
  %v619 = vrot.slane %v617, 4
  %621 = vst [vmem:[#allocation3 + $0x28] sm:$0xf0] %v619
  %622 = vst [vmem:[#allocation3 + $0x30] sm:$0xf] %v617
  %623 = vst [vmem:[#allocation3 + $0x10] sm:$0xf0] %v619
  %624 = vst [vmem:[#allocation3 + $0x18] sm:$0xf] %v617
  %v625 = vld [vmem:[#allocation2 + $0x80] sm:$0xff]
  %v626 = vld [vmem:[#allocation2 + $0x88] sm:$0xff]
  %v627 = vld [vmem:[#allocation2 + $0x90] sm:$0xff]
  %v628 = vld [vmem:[#allocation2 + $0x98] sm:$0xff]
  %v629 = vmax.f32 %v625, %v627
  %v630 = vmax.f32 %v626, %v628
  %v631 = vmax.f32 %v629, %v630
  %v632 = vadd.f32 %v631, %v572
  %v633 = vmax.f32 %v632, 0.0
  %v634 = vpack.c.bf16 %v633, %v633
  %635 = vst [vmem:[#allocation3 + $0x50] sm:$0xf] %v634
  %v637 = vrot.slane %v634, 4
  %639 = vst [vmem:[#allocation3 + $0x30] sm:$0xf0] %v637
  %640 = vst [vmem:[#allocation3 + $0x38] sm:$0xf] %v634
  %641 = vst [vmem:[#allocation3 + $0x18] sm:$0xf0] %v637
  %642 = vst [vmem:[#allocation3 + $0x20] sm:$0xf] %v634
  %v643 = vld [vmem:[#allocation2 + $0xa0] sm:$0xff]
  %v644 = vld [vmem:[#allocation2 + $0xa8] sm:$0xff]
  %v645 = vld [vmem:[#allocation2 + $0xb0] sm:$0xff]
  %v646 = vld [vmem:[#allocation2 + $0xb8] sm:$0xff]
  %v647 = vmax.f32 %v643, %v645
  %v648 = vmax.f32 %v644, %v646
  %v649 = vmax.f32 %v647, %v648
  %v650 = vadd.f32 %v649, %v572
  %v651 = vmax.f32 %v650, 0.0
  %v652 = vpack.c.bf16 %v651, %v651
  %v654 = vrot.slane %v652, 4
  %656 = vst [vmem:[#allocation3 + $0x50] sm:$0xf0] %v654
  %657 = vst [vmem:[#allocation3 + $0x58] sm:$0xf] %v652
  %658 = vst [vmem:[#allocation3 + $0x38] sm:$0xf0] %v654
  %659 = vst [vmem:[#allocation3 + $0x40] sm:$0xf] %v652
  %660 = vst [vmem:[#allocation3 + $0x20] sm:$0xf0] %v654
  %v661 = vld [vmem:[#allocation2 + $0xc0] sm:$0xff]
  %v662 = vld [vmem:[#allocation2 + $0xc8] sm:$0xff]
  %v663 = vld [vmem:[#allocation2 + $0xd0] sm:$0xff]
  %v664 = vld [vmem:[#allocation2 + $0xd8] sm:$0xff]
  %v665 = vmax.f32 %v661, %v663
  %v666 = vmax.f32 %v662, %v664
  %v667 = vmax.f32 %v665, %v666
  %v668 = vadd.f32 %v667, %v572
  %v669 = vmax.f32 %v668, 0.0
  %v670 = vpack.c.bf16 %v669, %v669
  %671 = vst [vmem:[#allocation3 + $0x78] sm:$0xf] %v670
  %v673 = vrot.slane %v670, 4
  %675 = vst [vmem:[#allocation3 + $0x58] sm:$0xf0] %v673
  %676 = vst [vmem:[#allocation3 + $0x60] sm:$0xf] %v670
  %677 = vst [vmem:[#allocation3 + $0x40] sm:$0xf0] %v673
  %678 = vst [vmem:[#allocation3 + $0x48] sm:$0xf] %v670
  %v679 = vld [vmem:[#allocation2 + $0xe0] sm:$0xff]
  %v680 = vld [vmem:[#allocation2 + $0xe8] sm:$0xff]
  %v681 = vld [vmem:[#allocation2 + $0xf0] sm:$0xff]
  %v682 = vld [vmem:[#allocation2 + $0xf8] sm:$0xff]
  %v683 = vmax.f32 %v679, %v681
  %v684 = vmax.f32 %v680, %v682
  %v685 = vmax.f32 %v683, %v684
  %v686 = vadd.f32 %v685, %v572
  %v687 = vmax.f32 %v686, 0.0
  %v688 = vpack.c.bf16 %v687, %v687
  %v690 = vrot.slane %v688, 4
  %692 = vst [vmem:[#allocation3 + $0x78] sm:$0xf0] %v690
  %693 = vst [vmem:[#allocation3 + $0x80] sm:$0xf] %v688
  %694 = vst [vmem:[#allocation3 + $0x60] sm:$0xf0] %v690
  %695 = vst [vmem:[#allocation3 + $0x68] sm:$0xf] %v688
  %696 = vst [vmem:[#allocation3 + $0x48] sm:$0xf0] %v690
  %v697 = vld [vmem:[#allocation2 + $0x100] sm:$0xff]
  %v698 = vld [vmem:[#allocation2 + $0x108] sm:$0xff]
  %v699 = vld [vmem:[#allocation2 + $0x110] sm:$0xff]
  %v700 = vld [vmem:[#allocation2 + $0x118] sm:$0xff]
  %v701 = vmax.f32 %v697, %v699
  %v702 = vmax.f32 %v698, %v700
  %v703 = vmax.f32 %v701, %v702
  %v704 = vadd.f32 %v703, %v572
  %v705 = vmax.f32 %v704, 0.0
  %v706 = vpack.c.bf16 %v705, %v705
  %v708 = vrot.slane %v706, 4
  %710 = vst [vmem:[#allocation3 + $0x80] sm:$0xf0] %v708
  %711 = vst [vmem:[#allocation3 + $0x88] sm:$0xf] %v706
  %712 = vst [vmem:[#allocation3 + $0x68] sm:$0xf0] %v708
  %713 = vst [vmem:[#allocation3 + $0x70] sm:$0xf] %v706
  %v714 = vld [vmem:[#allocation2 + $0x120] sm:$0xff]
  %v715 = vld [vmem:[#allocation2 + $0x128] sm:$0xff]
  %v716 = vld [vmem:[#allocation2 + $0x130] sm:$0xff]
  %v717 = vld [vmem:[#allocation2 + $0x138] sm:$0xff]
  %v718 = vmax.f32 %v714, %v716
  %v719 = vmax.f32 %v715, %v717
  %v720 = vmax.f32 %v718, %v719
  %v721 = vadd.f32 %v720, %v572
  %v722 = vmax.f32 %v721, 0.0
  %v723 = vpack.c.bf16 %v722, %v722
  %v725 = vrot.slane %v723, 4
  %727 = vst [vmem:[#allocation3 + $0x88] sm:$0xf0] %v725
  %728 = vst [vmem:[#allocation3 + $0x90] sm:$0xf] %v723
  %729 = vst [vmem:[#allocation3 + $0x70] sm:$0xf0] %v725
  %v730 = vld [vmem:[#allocation2 + $0x140] sm:$0xff]
  %v731 = vld [vmem:[#allocation2 + $0x148] sm:$0xff]
  %v732 = vld [vmem:[#allocation2 + $0x150] sm:$0xff]
  %v733 = vld [vmem:[#allocation2 + $0x158] sm:$0xff]
  %v734 = vmax.f32 %v730, %v732
  %v735 = vmax.f32 %v731, %v733
  %v736 = vmax.f32 %v734, %v735
  %v737 = vadd.f32 %v736, %v572
  %v738 = vmax.f32 %v737, 0.0
  %v739 = vpack.c.bf16 %v738, %v738
  %v741 = vrot.slane %v739, 4
  %743 = vst [vmem:[#allocation3 + $0x90] sm:$0xf0] %v741
  %744 = vst [vmem:[#allocation3 + $0x98] sm:$0xf] %v739
  %v745 = vld [vmem:[#allocation2 + $0x160] sm:$0xff]
  %v746 = vld [vmem:[#allocation2 + $0x168] sm:$0xff]
  %v747 = vld [vmem:[#allocation2 + $0x170] sm:$0xff]
  %v748 = vld [vmem:[#allocation2 + $0x178] sm:$0xff]
  %v749 = vmax.f32 %v745, %v747
  %v750 = vmax.f32 %v746, %v748
  %v751 = vmax.f32 %v749, %v750
  %v752 = vadd.f32 %v751, %v572
  %v753 = vmax.f32 %v752, 0.0
  %v754 = vpack.c.bf16 %v753, %v753
  %v756 = vrot.slane %v754, 4
  %758 = vst [vmem:[#allocation3 + $0x98] sm:$0xf0] %v756
  %v759 = vld [vmem:[#allocation3] sm:$0xff]
  %v760 = vld [vmem:[#allocation3 + $0x8] sm:$0xff]
  %v761 = vld [vmem:[#allocation3 + $0x10] sm:$0xff]
  %v762 = vld [vmem:[#allocation3 + $0x18] sm:$0xff]
  %v763 = vld [vmem:[#allocation3 + $0x20] sm:$0xff]
  %v764 = vld [vmem:[#allocation3 + $0x28] sm:$0xff]
  %v765 = vld [vmem:[#allocation3 + $0x30] sm:$0xff]
  %v766 = vld [vmem:[#allocation3 + $0x38] sm:$0xff]
  %v767 = vld [vmem:[#allocation3 + $0x40] sm:$0xff]
  %v768 = vld [vmem:[#allocation3 + $0x48] sm:$0xff]
  %v769 = vld [vmem:[#allocation3 + $0x50] sm:$0xff]
  %v770 = vld [vmem:[#allocation3 + $0x58] sm:$0xff]
  %v771 = vld [vmem:[#allocation3 + $0x60] sm:$0xff]
  %v772 = vld [vmem:[#allocation3 + $0x68] sm:$0xff]
  %v773 = vld [vmem:[#allocation3 + $0x70] sm:$0xff]
  %v774 = vld [vmem:[#allocation3 + $0x78] sm:$0xff]
  %v775 = vld [vmem:[#allocation3 + $0x80] sm:$0xff]
  %v776 = vld [vmem:[#allocation3 + $0x88] sm:$0xff]
  %v777 = vld [vmem:[#allocation3 + $0x90] sm:$0xff]
  %v778 = vld [vmem:[#allocation3 + $0x98] sm:$0xff]
  %v779 = vld [vmem:[%s2] sm:$0xff]
  %v780 = vld [vmem:[%s2 + $0x8] sm:$0xff]
  %v781 = vld [vmem:[%s2 + $0x10] sm:$0xff]
  %v782 = vld [vmem:[%s2 + $0x18] sm:$0xff]
  %v783 = vld [vmem:[%s2 + $0x20] sm:$0xff]
  %v784 = vld [vmem:[%s2 + $0x28] sm:$0xff]
  %v785 = vld [vmem:[%s2 + $0x30] sm:$0xff]
  %v786 = vld [vmem:[%s2 + $0x38] sm:$0xff]
  %v787 = vld [vmem:[%s2 + $0x40] sm:$0xff]
  %v788 = vld [vmem:[%s2 + $0x48] sm:$0xff]
  %v789 = vld [vmem:[%s2 + $0x50] sm:$0xff]
  %v790 = vld [vmem:[%s2 + $0x58] sm:$0xff]
  %v791 = vld [vmem:[%s2 + $0x60] sm:$0xff]
  %v792 = vld [vmem:[%s2 + $0x68] sm:$0xff]
  %v793 = vld [vmem:[%s2 + $0x70] sm:$0xff]
  %v794 = vld [vmem:[%s2 + $0x78] sm:$0xff]
  %v795 = vld [vmem:[%s2 + $0x80] sm:$0xff]
  %v796 = vld [vmem:[%s2 + $0x88] sm:$0xff]
  %v797 = vld [vmem:[%s2 + $0x90] sm:$0xff]
  %v798 = vld [vmem:[%s2 + $0x98] sm:$0xff]
  %v799 = vld [vmem:[%s2 + $0xa0] sm:$0xff]
  %v800 = vld [vmem:[%s2 + $0xa8] sm:$0xff]
  %v801 = vld [vmem:[%s2 + $0xb0] sm:$0xff]
  %v802 = vld [vmem:[%s2 + $0xb8] sm:$0xff]
  %v803 = vld [vmem:[%s2 + $0xc0] sm:$0xff]
  %v804 = vld [vmem:[%s2 + $0xc8] sm:$0xff]
  %v805 = vld [vmem:[%s2 + $0xd0] sm:$0xff]
  %v806 = vld [vmem:[%s2 + $0xd8] sm:$0xff]
  %v807 = vld [vmem:[%s2 + $0xe0] sm:$0xff]
  %v808 = vld [vmem:[%s2 + $0xe8] sm:$0xff]
  %v809 = vld [vmem:[%s2 + $0xf0] sm:$0xff]
  %v810 = vld [vmem:[%s2 + $0xf8] sm:$0xff]
  %v811 = vld [vmem:[%s2 + $0x100] sm:$0xff]
  %v812 = vld [vmem:[%s2 + $0x108] sm:$0xff]
  %v813 = vld [vmem:[%s2 + $0x110] sm:$0xff]
  %v814 = vld [vmem:[%s2 + $0x118] sm:$0xff]
  %v815 = vld [vmem:[%s2 + $0x120] sm:$0xff]
  %v816 = vld [vmem:[%s2 + $0x128] sm:$0xff]
  %v817 = vld [vmem:[%s2 + $0x130] sm:$0xff]
  %v818 = vld [vmem:[%s2 + $0x138] sm:$0xff]
  %v819 = vld [vmem:[%s2 + $0x140] sm:$0xff]
  %v820 = vld [vmem:[%s2 + $0x148] sm:$0xff]
  %v821 = vld [vmem:[%s2 + $0x150] sm:$0xff]
  %v822 = vld [vmem:[%s2 + $0x158] sm:$0xff]
  %v823 = vld [vmem:[%s2 + $0x160] sm:$0xff]
  %v824 = vld [vmem:[%s2 + $0x168] sm:$0xff]
  %v825 = vld [vmem:[%s2 + $0x170] sm:$0xff]
  %v826 = vld [vmem:[%s2 + $0x178] sm:$0xff]
  %v827 = vld [vmem:[%s2 + $0x180] sm:$0xff]
  %v828 = vld [vmem:[%s2 + $0x188] sm:$0xff]
  %v829 = vld [vmem:[%s2 + $0x190] sm:$0xff]
  %v830 = vld [vmem:[%s2 + $0x198] sm:$0xff]
  %v831 = vld [vmem:[%s2 + $0x1a0] sm:$0xff]
  %v832 = vld [vmem:[%s2 + $0x1a8] sm:$0xff]
  %v833 = vld [vmem:[%s2 + $0x1b0] sm:$0xff]
  %v834 = vld [vmem:[%s2 + $0x1b8] sm:$0xff]
  %v835 = vld [vmem:[%s2 + $0x1c0] sm:$0xff]
  %v836 = vld [vmem:[%s2 + $0x1c8] sm:$0xff]
  %v837 = vld [vmem:[%s2 + $0x1d0] sm:$0xff]
  %v838 = vld [vmem:[%s2 + $0x1d8] sm:$0xff]
  %v839 = vld [vmem:[%s2 + $0x1e0] sm:$0xff]
  %v840 = vld [vmem:[%s2 + $0x1e8] sm:$0xff]
  %v841 = vld [vmem:[%s2 + $0x1f0] sm:$0xff]
  %v842 = vld [vmem:[%s2 + $0x1f8] sm:$0xff]
  %v843 = vld [vmem:[%s2 + $0x200] sm:$0xff]
  %v844 = vld [vmem:[%s2 + $0x208] sm:$0xff]
  %v845 = vld [vmem:[%s2 + $0x210] sm:$0xff]
  %v846 = vld [vmem:[%s2 + $0x218] sm:$0xff]
  %v847 = vld [vmem:[%s2 + $0x220] sm:$0xff]
  %v848 = vld [vmem:[%s2 + $0x228] sm:$0xff]
  %v849 = vld [vmem:[%s2 + $0x230] sm:$0xff]
  %v850 = vld [vmem:[%s2 + $0x238] sm:$0xff]
  %v851 = vld [vmem:[%s2 + $0x240] sm:$0xff]
  %v852 = vld [vmem:[%s2 + $0x248] sm:$0xff]
  %v853 = vld [vmem:[%s2 + $0x250] sm:$0xff]
  %v854 = vld [vmem:[%s2 + $0x258] sm:$0xff]
  %v855 = vld [vmem:[%s2 + $0x260] sm:$0xff]
  %v856 = vld [vmem:[%s2 + $0x268] sm:$0xff]
  %v857 = vld [vmem:[%s2 + $0x270] sm:$0xff]
  %v858 = vld [vmem:[%s2 + $0x278] sm:$0xff]
  %v939 = vunpack.c.l.b16 %v779
  %v940 = vunpack.c.h.b16 %v779
  %v941 = vunpack.c.l.b16 %v780
  %v942 = vunpack.c.h.b16 %v780
  %v943 = vunpack.c.l.b16 %v781
  %v944 = vunpack.c.h.b16 %v781
  %v945 = vunpack.c.l.b16 %v782
  %v946 = vunpack.c.h.b16 %v782
  %v947 = vunpack.c.l.b16 %v783
  %v948 = vunpack.c.h.b16 %v783
  %v949 = vunpack.c.l.b16 %v784
  %v950 = vunpack.c.h.b16 %v784
  %v951 = vunpack.c.l.b16 %v785
  %v952 = vunpack.c.h.b16 %v785
  %v953 = vunpack.c.l.b16 %v786
  %v954 = vunpack.c.h.b16 %v786
  %v955 = vunpack.c.l.b16 %v787
  %v956 = vunpack.c.h.b16 %v787
  %v957 = vunpack.c.l.b16 %v788
  %v958 = vunpack.c.h.b16 %v788
  %v959 = vunpack.c.l.b16 %v789
  %v960 = vunpack.c.h.b16 %v789
  %v961 = vunpack.c.l.b16 %v790
  %v962 = vunpack.c.h.b16 %v790
  %v963 = vunpack.c.l.b16 %v791
  %v964 = vunpack.c.h.b16 %v791
  %v965 = vunpack.c.l.b16 %v792
  %v966 = vunpack.c.h.b16 %v792
  %v967 = vunpack.c.l.b16 %v793
  %v968 = vunpack.c.h.b16 %v793
  %v969 = vunpack.c.l.b16 %v794
  %v970 = vunpack.c.h.b16 %v794
  %v971 = vunpack.c.l.b16 %v795
  %v972 = vunpack.c.h.b16 %v795
  %v973 = vunpack.c.l.b16 %v796
  %v974 = vunpack.c.h.b16 %v796
  %v975 = vunpack.c.l.b16 %v797
  %v976 = vunpack.c.h.b16 %v797
  %v977 = vunpack.c.l.b16 %v798
  %v978 = vunpack.c.h.b16 %v798
  %v979 = vunpack.c.l.b16 %v799
  %v980 = vunpack.c.h.b16 %v799
  %v981 = vunpack.c.l.b16 %v800
  %v982 = vunpack.c.h.b16 %v800
  %v983 = vunpack.c.l.b16 %v801
  %v984 = vunpack.c.h.b16 %v801
  %v985 = vunpack.c.l.b16 %v802
  %v986 = vunpack.c.h.b16 %v802
  %v987 = vunpack.c.l.b16 %v803
  %v988 = vunpack.c.h.b16 %v803
  %v989 = vunpack.c.l.b16 %v804
  %v990 = vunpack.c.h.b16 %v804
  %v991 = vunpack.c.l.b16 %v805
  %v992 = vunpack.c.h.b16 %v805
  %v993 = vunpack.c.l.b16 %v806
  %v994 = vunpack.c.h.b16 %v806
  %v995 = vunpack.c.l.b16 %v807
  %v996 = vunpack.c.h.b16 %v807
  %v997 = vunpack.c.l.b16 %v808
  %v998 = vunpack.c.h.b16 %v808
  %v999 = vunpack.c.l.b16 %v809
  %v1000 = vunpack.c.h.b16 %v809
  %v1001 = vunpack.c.l.b16 %v810
  %v1002 = vunpack.c.h.b16 %v810
  %v1003 = vunpack.c.l.b16 %v811
  %v1004 = vunpack.c.h.b16 %v811
  %v1005 = vunpack.c.l.b16 %v812
  %v1006 = vunpack.c.h.b16 %v812
  %v1007 = vunpack.c.l.b16 %v813
  %v1008 = vunpack.c.h.b16 %v813
  %v1009 = vunpack.c.l.b16 %v814
  %v1010 = vunpack.c.h.b16 %v814
  %v1011 = vunpack.c.l.b16 %v815
  %v1012 = vunpack.c.h.b16 %v815
  %v1013 = vunpack.c.l.b16 %v816
  %v1014 = vunpack.c.h.b16 %v816
  %v1015 = vunpack.c.l.b16 %v817
  %v1016 = vunpack.c.h.b16 %v817
  %v1017 = vunpack.c.l.b16 %v818
  %v1018 = vunpack.c.h.b16 %v818
  %v1019 = vunpack.c.l.b16 %v819
  %v1020 = vunpack.c.h.b16 %v819
  %v1021 = vunpack.c.l.b16 %v820
  %v1022 = vunpack.c.h.b16 %v820
  %v1023 = vunpack.c.l.b16 %v821
  %v1024 = vunpack.c.h.b16 %v821
  %v1025 = vunpack.c.l.b16 %v822
  %v1026 = vunpack.c.h.b16 %v822
  %v1027 = vunpack.c.l.b16 %v823
  %v1028 = vunpack.c.h.b16 %v823
  %v1029 = vunpack.c.l.b16 %v824
  %v1030 = vunpack.c.h.b16 %v824
  %v1031 = vunpack.c.l.b16 %v825
  %v1032 = vunpack.c.h.b16 %v825
  %v1033 = vunpack.c.l.b16 %v826
  %v1034 = vunpack.c.h.b16 %v826
  %v1035 = vunpack.c.l.b16 %v827
  %v1036 = vunpack.c.h.b16 %v827
  %v1037 = vunpack.c.l.b16 %v828
  %v1038 = vunpack.c.h.b16 %v828
  %v1039 = vunpack.c.l.b16 %v829
  %v1040 = vunpack.c.h.b16 %v829
  %v1041 = vunpack.c.l.b16 %v830
  %v1042 = vunpack.c.h.b16 %v830
  %v1043 = vunpack.c.l.b16 %v831
  %v1044 = vunpack.c.h.b16 %v831
  %v1045 = vunpack.c.l.b16 %v832
  %v1046 = vunpack.c.h.b16 %v832
  %v1047 = vunpack.c.l.b16 %v833
  %v1048 = vunpack.c.h.b16 %v833
  %v1049 = vunpack.c.l.b16 %v834
  %v1050 = vunpack.c.h.b16 %v834
  %v1051 = vunpack.c.l.b16 %v835
  %v1052 = vunpack.c.h.b16 %v835
  %v1053 = vunpack.c.l.b16 %v836
  %v1054 = vunpack.c.h.b16 %v836
  %v1055 = vunpack.c.l.b16 %v837
  %v1056 = vunpack.c.h.b16 %v837
  %v1057 = vunpack.c.l.b16 %v838
  %v1058 = vunpack.c.h.b16 %v838
  %v1059 = vunpack.c.l.b16 %v839
  %v1060 = vunpack.c.h.b16 %v839
  %v1061 = vunpack.c.l.b16 %v840
  %v1062 = vunpack.c.h.b16 %v840
  %v1063 = vunpack.c.l.b16 %v841
  %v1064 = vunpack.c.h.b16 %v841
  %v1065 = vunpack.c.l.b16 %v842
  %v1066 = vunpack.c.h.b16 %v842
  %v1067 = vunpack.c.l.b16 %v843
  %v1068 = vunpack.c.h.b16 %v843
  %v1069 = vunpack.c.l.b16 %v844
  %v1070 = vunpack.c.h.b16 %v844
  %v1071 = vunpack.c.l.b16 %v845
  %v1072 = vunpack.c.h.b16 %v845
  %v1073 = vunpack.c.l.b16 %v846
  %v1074 = vunpack.c.h.b16 %v846
  %v1075 = vunpack.c.l.b16 %v847
  %v1076 = vunpack.c.h.b16 %v847
  %v1077 = vunpack.c.l.b16 %v848
  %v1078 = vunpack.c.h.b16 %v848
  %v1079 = vunpack.c.l.b16 %v849
  %v1080 = vunpack.c.h.b16 %v849
  %v1081 = vunpack.c.l.b16 %v850
  %v1082 = vunpack.c.h.b16 %v850
  %v1083 = vunpack.c.l.b16 %v851
  %v1084 = vunpack.c.h.b16 %v851
  %v1085 = vunpack.c.l.b16 %v852
  %v1086 = vunpack.c.h.b16 %v852
  %v1087 = vunpack.c.l.b16 %v853
  %v1088 = vunpack.c.h.b16 %v853
  %v1089 = vunpack.c.l.b16 %v854
  %v1090 = vunpack.c.h.b16 %v854
  %v1091 = vunpack.c.l.b16 %v855
  %v1092 = vunpack.c.h.b16 %v855
  %v1093 = vunpack.c.l.b16 %v856
  %v1094 = vunpack.c.h.b16 %v856
  %v1095 = vunpack.c.l.b16 %v857
  %v1096 = vunpack.c.h.b16 %v857
  %v1097 = vunpack.c.l.b16 %v858
  %v1098 = vunpack.c.h.b16 %v858
  %v1099 = vpack.c.b16 %v941, %v939
  %v1100 = vpack.c.b16 %v942, %v940
  %v1101 = vpack.c.b16 %v945, %v943
  %v1102 = vpack.c.b16 %v946, %v944
  %v1103 = vpack.c.b16 %v949, %v947
  %v1104 = vpack.c.b16 %v950, %v948
  %v1105 = vpack.c.b16 %v953, %v951
  %v1106 = vpack.c.b16 %v954, %v952
  %v1107 = vpack.c.b16 %v957, %v955
  %v1108 = vpack.c.b16 %v958, %v956
  %v1109 = vpack.c.b16 %v961, %v959
  %v1110 = vpack.c.b16 %v962, %v960
  %v1111 = vpack.c.b16 %v965, %v963
  %v1112 = vpack.c.b16 %v966, %v964
  %v1113 = vpack.c.b16 %v969, %v967
  %v1114 = vpack.c.b16 %v970, %v968
  %v1115 = vpack.c.b16 %v973, %v971
  %v1116 = vpack.c.b16 %v974, %v972
  %v1117 = vpack.c.b16 %v977, %v975
  %v1118 = vpack.c.b16 %v978, %v976
  %v1119 = vpack.c.b16 %v981, %v979
  %v1120 = vpack.c.b16 %v982, %v980
  %v1121 = vpack.c.b16 %v985, %v983
  %v1122 = vpack.c.b16 %v986, %v984
  %v1123 = vpack.c.b16 %v989, %v987
  %v1124 = vpack.c.b16 %v990, %v988
  %v1125 = vpack.c.b16 %v993, %v991
  %v1126 = vpack.c.b16 %v994, %v992
  %v1127 = vpack.c.b16 %v997, %v995
  %v1128 = vpack.c.b16 %v998, %v996
  %v1129 = vpack.c.b16 %v1001, %v999
  %v1130 = vpack.c.b16 %v1002, %v1000
  %v1131 = vpack.c.b16 %v1005, %v1003
  %v1132 = vpack.c.b16 %v1006, %v1004
  %v1133 = vpack.c.b16 %v1009, %v1007
  %v1134 = vpack.c.b16 %v1010, %v1008
  %v1135 = vpack.c.b16 %v1013, %v1011
  %v1136 = vpack.c.b16 %v1014, %v1012
  %v1137 = vpack.c.b16 %v1017, %v1015
  %v1138 = vpack.c.b16 %v1018, %v1016
  %v1139 = vpack.c.b16 %v1021, %v1019
  %v1140 = vpack.c.b16 %v1022, %v1020
  %v1141 = vpack.c.b16 %v1025, %v1023
  %v1142 = vpack.c.b16 %v1026, %v1024
  %v1143 = vpack.c.b16 %v1029, %v1027
  %v1144 = vpack.c.b16 %v1030, %v1028
  %v1145 = vpack.c.b16 %v1033, %v1031
  %v1146 = vpack.c.b16 %v1034, %v1032
  %v1147 = vpack.c.b16 %v1037, %v1035
  %v1148 = vpack.c.b16 %v1038, %v1036
  %v1149 = vpack.c.b16 %v1041, %v1039
  %v1150 = vpack.c.b16 %v1042, %v1040
  %v1151 = vpack.c.b16 %v1045, %v1043
  %v1152 = vpack.c.b16 %v1046, %v1044
  %v1153 = vpack.c.b16 %v1049, %v1047
  %v1154 = vpack.c.b16 %v1050, %v1048
  %v1155 = vpack.c.b16 %v1053, %v1051
  %v1156 = vpack.c.b16 %v1054, %v1052
  %v1157 = vpack.c.b16 %v1057, %v1055
  %v1158 = vpack.c.b16 %v1058, %v1056
  %v1159 = vpack.c.b16 %v1061, %v1059
  %v1160 = vpack.c.b16 %v1062, %v1060
  %v1161 = vpack.c.b16 %v1065, %v1063
  %v1162 = vpack.c.b16 %v1066, %v1064
  %v1163 = vpack.c.b16 %v1069, %v1067
  %v1164 = vpack.c.b16 %v1070, %v1068
  %v1165 = vpack.c.b16 %v1073, %v1071
  %v1166 = vpack.c.b16 %v1074, %v1072
  %v1167 = vpack.c.b16 %v1077, %v1075
  %v1168 = vpack.c.b16 %v1078, %v1076
  %v1169 = vpack.c.b16 %v1081, %v1079
  %v1170 = vpack.c.b16 %v1082, %v1080
  %v1171 = vpack.c.b16 %v1085, %v1083
  %v1172 = vpack.c.b16 %v1086, %v1084
  %v1173 = vpack.c.b16 %v1089, %v1087
  %v1174 = vpack.c.b16 %v1090, %v1088
  %v1175 = vpack.c.b16 %v1093, %v1091
  %v1176 = vpack.c.b16 %v1094, %v1092
  %v1177 = vpack.c.b16 %v1097, %v1095
  %v1178 = vpack.c.b16 %v1098, %v1096
  %1259 = vmatprep.subr.bf16.mxu0 %v1100
  %1260 = vmatpush1.bf16.msra.mxu0 %v1099
  %1261 = vmatprep.subr.bf16.mxu0 %v1102
  %1262 = vmatpush1.bf16.msra.mxu0 %v1101
  %1263 = vmatprep.subr.bf16.mxu0 %v1104
  %1264 = vmatpush1.bf16.msra.mxu0 %v1103
  %1265 = vmatprep.subr.bf16.mxu0 %v1106
  %1266 = vmatpush1.bf16.msra.mxu0 %v1105
  %1267 = vmatprep.subr.bf16.mxu0 %v1108
  %1268 = vmatpush1.bf16.msra.mxu0 %v1107
  %1269 = vmatprep.subr.bf16.mxu0 %v1110
  %1270 = vmatpush1.bf16.msra.mxu0 %v1109
  %1271 = vmatprep.subr.bf16.mxu0 %v1112
  %1272 = vmatpush1.bf16.msra.mxu0 %v1111
  %1273 = vmatprep.subr.bf16.mxu0 %v1114
  %1274 = vmatpush1.bf16.msra.mxu0 %v1113
  %1275 = vmatprep.subr.bf16.mxu0 %v1116
  %1276 = vmatpush1.bf16.msra.mxu0 %v1115
  %1277 = vmatprep.subr.bf16.mxu0 %v1118
  %1278 = vmatpush1.bf16.msra.mxu0 %v1117
  %1279 = vmatprep.subr.bf16.mxu0 %v1120
  %1280 = vmatpush1.bf16.msra.mxu0 %v1119
  %1281 = vmatprep.subr.bf16.mxu0 %v1122
  %1282 = vmatpush1.bf16.msra.mxu0 %v1121
  %1283 = vmatprep.subr.bf16.mxu0 %v1124
  %1284 = vmatpush1.bf16.msra.mxu0 %v1123
  %1285 = vmatprep.subr.bf16.mxu0 %v1126
  %1286 = vmatpush1.bf16.msra.mxu0 %v1125
  %1287 = vmatprep.subr.bf16.mxu0 %v1128
  %1288 = vmatpush1.bf16.msra.mxu0 %v1127
  %1289 = vmatprep.subr.bf16.mxu0 %v1130
  %1290 = vmatpush1.bf16.msra.mxu0 %v1129
  %1291 = vmatprep.mubr.bf16.mxu0 %v760
  %1292 = vmatmul.mubr.bf16.gmra.mrb[0].mxu0 %v759
  %v1293 = vpop.f32.mrb[0].mxu0
  %v1294 = vadd.f32 0.0, %v1293
  %v1295 = vpop.f32.mrb[0].mxu0
  %v1296 = vadd.f32 0.0, %v1295
  %v1297 = vpop.f32.mrb[0].mxu0
  %v1298 = vadd.f32 0.0, %v1297
  %v1299 = vpop.f32.mrb[0].mxu0
  %v1300 = vadd.f32 0.0, %v1299
  %1301 = vmatprep.mubr.bf16.mxu0 %v765
  %1302 = vmatmul.mubr.bf16.gmra.mrb[0].mxu0 %v764
  %v1303 = vpop.f32.mrb[0].mxu0
  %v1304 = vadd.f32 0.0, %v1303
  %v1305 = vpop.f32.mrb[0].mxu0
  %v1306 = vadd.f32 0.0, %v1305
  %v1307 = vpop.f32.mrb[0].mxu0
  %v1308 = vadd.f32 0.0, %v1307
  %v1309 = vpop.f32.mrb[0].mxu0
  %v1310 = vadd.f32 0.0, %v1309
  %1311 = vmatprep.mubr.bf16.mxu0 %v770
  %1312 = vmatmul.mubr.bf16.gmra.mrb[0].mxu0 %v769
  %v1313 = vpop.f32.mrb[0].mxu0
  %v1314 = vadd.f32 0.0, %v1313
  %v1315 = vpop.f32.mrb[0].mxu0
  %v1316 = vadd.f32 0.0, %v1315
  %v1317 = vpop.f32.mrb[0].mxu0
  %v1318 = vadd.f32 0.0, %v1317
  %v1319 = vpop.f32.mrb[0].mxu0
  %v1320 = vadd.f32 0.0, %v1319
  %1321 = vmatprep.mubr.bf16.mxu0 %v775
  %1322 = vmatmul.mubr.bf16.gmra.mrb[0].mxu0 %v774
  %v1323 = vpop.f32.mrb[0].mxu0
  %v1324 = vadd.f32 0.0, %v1323
  %v1325 = vpop.f32.mrb[0].mxu0
  %v1326 = vadd.f32 0.0, %v1325
  %v1327 = vpop.f32.mrb[0].mxu0
  %v1328 = vadd.f32 0.0, %v1327
  %v1329 = vpop.f32.mrb[0].mxu0
  %v1330 = vadd.f32 0.0, %v1329
  %1331 = vdwg.mxu0
  %1332 = vmatprep.subr.bf16.mxu0 %v1132
  %1333 = vmatpush1.bf16.msra.mxu0 %v1131
  %1334 = vmatprep.subr.bf16.mxu0 %v1134
  %1335 = vmatpush1.bf16.msra.mxu0 %v1133
  %1336 = vmatprep.subr.bf16.mxu0 %v1136
  %1337 = vmatpush1.bf16.msra.mxu0 %v1135
  %1338 = vmatprep.subr.bf16.mxu0 %v1138
  %1339 = vmatpush1.bf16.msra.mxu0 %v1137
  %1340 = vmatprep.subr.bf16.mxu0 %v1140
  %1341 = vmatpush1.bf16.msra.mxu0 %v1139
  %1342 = vmatprep.subr.bf16.mxu0 %v1142
  %1343 = vmatpush1.bf16.msra.mxu0 %v1141
  %1344 = vmatprep.subr.bf16.mxu0 %v1144
  %1345 = vmatpush1.bf16.msra.mxu0 %v1143
  %1346 = vmatprep.subr.bf16.mxu0 %v1146
  %1347 = vmatpush1.bf16.msra.mxu0 %v1145
  %1348 = vmatprep.subr.bf16.mxu0 %v1148
  %1349 = vmatpush1.bf16.msra.mxu0 %v1147
  %1350 = vmatprep.subr.bf16.mxu0 %v1150
  %1351 = vmatpush1.bf16.msra.mxu0 %v1149
  %1352 = vmatprep.subr.bf16.mxu0 %v1152
  %1353 = vmatpush1.bf16.msra.mxu0 %v1151
  %1354 = vmatprep.subr.bf16.mxu0 %v1154
  %1355 = vmatpush1.bf16.msra.mxu0 %v1153
  %1356 = vmatprep.subr.bf16.mxu0 %v1156
  %1357 = vmatpush1.bf16.msra.mxu0 %v1155
  %1358 = vmatprep.subr.bf16.mxu0 %v1158
  %1359 = vmatpush1.bf16.msra.mxu0 %v1157
  %1360 = vmatprep.subr.bf16.mxu0 %v1160
  %1361 = vmatpush1.bf16.msra.mxu0 %v1159
  %1362 = vmatprep.subr.bf16.mxu0 %v1162
  %1363 = vmatpush1.bf16.msra.mxu0 %v1161
  %1364 = vmatprep.mubr.bf16.mxu0 %v762
  %1365 = vmatmul.mubr.bf16.gmra.mrb[0].mxu0 %v761
  %v1366 = vpop.f32.mrb[0].mxu0
  %v1367 = vadd.f32 %v1294, %v1366
  %v1368 = vpop.f32.mrb[0].mxu0
  %v1369 = vadd.f32 %v1296, %v1368
  %v1370 = vpop.f32.mrb[0].mxu0
  %v1371 = vadd.f32 %v1298, %v1370
  %v1372 = vpop.f32.mrb[0].mxu0
  %v1373 = vadd.f32 %v1300, %v1372
  %1374 = vmatprep.mubr.bf16.mxu0 %v767
  %1375 = vmatmul.mubr.bf16.gmra.mrb[0].mxu0 %v766
  %v1376 = vpop.f32.mrb[0].mxu0
  %v1377 = vadd.f32 %v1304, %v1376
  %v1378 = vpop.f32.mrb[0].mxu0
  %v1379 = vadd.f32 %v1306, %v1378
  %v1380 = vpop.f32.mrb[0].mxu0
  %v1381 = vadd.f32 %v1308, %v1380
  %v1382 = vpop.f32.mrb[0].mxu0
  %v1383 = vadd.f32 %v1310, %v1382
  %1384 = vmatprep.mubr.bf16.mxu0 %v772
  %1385 = vmatmul.mubr.bf16.gmra.mrb[0].mxu0 %v771
  %v1386 = vpop.f32.mrb[0].mxu0
  %v1387 = vadd.f32 %v1314, %v1386
  %v1388 = vpop.f32.mrb[0].mxu0
  %v1389 = vadd.f32 %v1316, %v1388
  %v1390 = vpop.f32.mrb[0].mxu0
  %v1391 = vadd.f32 %v1318, %v1390
  %v1392 = vpop.f32.mrb[0].mxu0
  %v1393 = vadd.f32 %v1320, %v1392
  %1394 = vmatprep.mubr.bf16.mxu0 %v777
  %1395 = vmatmul.mubr.bf16.gmra.mrb[0].mxu0 %v776
  %v1396 = vpop.f32.mrb[0].mxu0
  %v1397 = vadd.f32 %v1324, %v1396
  %v1398 = vpop.f32.mrb[0].mxu0
  %v1399 = vadd.f32 %v1326, %v1398
  %v1400 = vpop.f32.mrb[0].mxu0
  %v1401 = vadd.f32 %v1328, %v1400
  %v1402 = vpop.f32.mrb[0].mxu0
  %v1403 = vadd.f32 %v1330, %v1402
  %1404 = vdwg.mxu0
  %1405 = vmatprep.subr.bf16.mxu0 %v1164
  %1406 = vmatpush1.bf16.msra.mxu0 %v1163
  %1407 = vmatprep.subr.bf16.mxu0 %v1166
  %1408 = vmatpush1.bf16.msra.mxu0 %v1165
  %1409 = vmatprep.subr.bf16.mxu0 %v1168
  %1410 = vmatpush1.bf16.msra.mxu0 %v1167
  %1411 = vmatprep.subr.bf16.mxu0 %v1170
  %1412 = vmatpush1.bf16.msra.mxu0 %v1169
  %1413 = vmatprep.subr.bf16.mxu0 %v1172
  %1414 = vmatpush1.bf16.msra.mxu0 %v1171
  %1415 = vmatprep.subr.bf16.mxu0 %v1174
  %1416 = vmatpush1.bf16.msra.mxu0 %v1173
  %1417 = vmatprep.subr.bf16.mxu0 %v1176
  %1418 = vmatpush1.bf16.msra.mxu0 %v1175
  %1419 = vmatprep.subr.bf16.mxu0 %v1178
  %1420 = vmatpush1.bf16.msra.mxu0 %v1177
  %1421 = vmatprep.subr.bf16.mxu0 0
  %1422 = vmatpush1.bf16.msra.mxu0 0
  %1423 = vmatprep.subr.bf16.mxu0 0
  %1424 = vmatpush1.bf16.msra.mxu0 0
  %1425 = vmatprep.subr.bf16.mxu0 0
  %1426 = vmatpush1.bf16.msra.mxu0 0
  %1427 = vmatprep.subr.bf16.mxu0 0
  %1428 = vmatpush1.bf16.msra.mxu0 0
  %1429 = vmatprep.subr.bf16.mxu0 0
  %1430 = vmatpush1.bf16.msra.mxu0 0
  %1431 = vmatprep.subr.bf16.mxu0 0
  %1432 = vmatpush1.bf16.msra.mxu0 0
  %1433 = vmatprep.subr.bf16.mxu0 0
  %1434 = vmatpush1.bf16.msra.mxu0 0
  %1435 = vmatprep.subr.bf16.mxu0 0
  %1436 = vmatpush1.bf16.msra.mxu0 0
  %1437 = vmatprep.mubr.bf16.mxu0 0
  %1438 = vmatmul.mubr.bf16.gmra.mrb[0].mxu0 %v763
  %v1439 = vpop.f32.mrb[0].mxu0
  %v1440 = vadd.f32 %v1367, %v1439
  %v1441 = vpop.f32.mrb[0].mxu0
  %v1442 = vadd.f32 %v1369, %v1441
  %v1443 = vpop.f32.mrb[0].mxu0
  %v1444 = vadd.f32 %v1371, %v1443
  %v1445 = vpop.f32.mrb[0].mxu0
  %v1446 = vadd.f32 %v1373, %v1445
  %1447 = vmatprep.mubr.bf16.mxu0 0
  %1448 = vmatmul.mubr.bf16.gmra.mrb[0].mxu0 %v768
  %v1449 = vpop.f32.mrb[0].mxu0
  %v1450 = vadd.f32 %v1377, %v1449
  %v1451 = vpop.f32.mrb[0].mxu0
  %v1452 = vadd.f32 %v1379, %v1451
  %v1453 = vpop.f32.mrb[0].mxu0
  %v1454 = vadd.f32 %v1381, %v1453
  %v1455 = vpop.f32.mrb[0].mxu0
  %v1456 = vadd.f32 %v1383, %v1455
  %1457 = vmatprep.mubr.bf16.mxu0 0
  %1458 = vmatmul.mubr.bf16.gmra.mrb[0].mxu0 %v773
  %v1459 = vpop.f32.mrb[0].mxu0
  %v1460 = vadd.f32 %v1387, %v1459
  %v1461 = vpop.f32.mrb[0].mxu0
  %v1462 = vadd.f32 %v1389, %v1461
  %v1463 = vpop.f32.mrb[0].mxu0
  %v1464 = vadd.f32 %v1391, %v1463
  %v1465 = vpop.f32.mrb[0].mxu0
  %v1466 = vadd.f32 %v1393, %v1465
  %1467 = vmatprep.mubr.bf16.mxu0 0
  %1468 = vmatmul.mubr.bf16.gmra.mrb[0].mxu0 %v778
  %v1469 = vpop.f32.mrb[0].mxu0
  %v1470 = vadd.f32 %v1397, %v1469
  %v1471 = vpop.f32.mrb[0].mxu0
  %v1472 = vadd.f32 %v1399, %v1471
  %v1473 = vpop.f32.mrb[0].mxu0
  %v1474 = vadd.f32 %v1401, %v1473
  %v1475 = vpop.f32.mrb[0].mxu0
  %v1476 = vadd.f32 %v1403, %v1475
  %1477 = vdwg.mxu0
  %1478 = vst [vmem:[#allocation4] sm:$0xff] %v1440
  %1479 = vst [vmem:[#allocation4 + $0x8] sm:$0xff] %v1442
  %1480 = vst [vmem:[#allocation4 + $0x10] sm:$0xff] %v1444
  %1481 = vst [vmem:[#allocation4 + $0x18] sm:$0xff] %v1446
  %1482 = vst [vmem:[#allocation4 + $0x20] sm:$0xff] %v1450
  %1483 = vst [vmem:[#allocation4 + $0x28] sm:$0xff] %v1452
  %1484 = vst [vmem:[#allocation4 + $0x30] sm:$0xff] %v1454
  %1485 = vst [vmem:[#allocation4 + $0x38] sm:$0xff] %v1456
  %1486 = vst [vmem:[#allocation4 + $0x40] sm:$0xff] %v1460
  %1487 = vst [vmem:[#allocation4 + $0x48] sm:$0xff] %v1462
  %1488 = vst [vmem:[#allocation4 + $0x50] sm:$0xff] %v1464
  %1489 = vst [vmem:[#allocation4 + $0x58] sm:$0xff] %v1466
  %1490 = vst [vmem:[#allocation4 + $0x60] sm:$0xff] %v1470
  %1491 = vst [vmem:[#allocation4 + $0x68] sm:$0xff] %v1472
  %1492 = vst [vmem:[#allocation4 + $0x70] sm:$0xff] %v1474
  %1493 = vst [vmem:[#allocation4 + $0x78] sm:$0xff] %v1476
  %v1494 = vld [vmem:[%s5 + $0x1] sm:$0x1]
  %v1495 = vld [vmem:[#allocation4] sm:$0xff]
  %v1496 = vld [vmem:[#allocation4 + $0x8] sm:$0xff]
  %v1497 = vld [vmem:[#allocation4 + $0x10] sm:$0xff]
  %v1498 = vld [vmem:[#allocation4 + $0x18] sm:$0xff]
  %v1499 = vmax.f32 %v1495, %v1497
  %v1500 = vmax.f32 %v1496, %v1498
  %v1501 = vmax.f32 %v1499, %v1500
  %v1502 = vlaneseq
  %v1503 = vshrl.u32 %v1502, 7
  %v1504 = vsub.s32 0, %v1503
  %v1505 = vrot.slane %v1494, %v1504
  %v1506 = vadd.f32 %v1501, %v1505
  %v1507 = vmax.f32 %v1506, 0.0
  %v1508 = vpack.c.bf16 %v1507, %v1507
  %1509 = vst [vmem:[#allocation5] sm:$0xf] %v1508
  %v1510 = vld [vmem:[#allocation4 + $0x20] sm:$0xff]
  %v1511 = vld [vmem:[#allocation4 + $0x28] sm:$0xff]
  %v1512 = vld [vmem:[#allocation4 + $0x30] sm:$0xff]
  %v1513 = vld [vmem:[#allocation4 + $0x38] sm:$0xff]
  %v1514 = vmax.f32 %v1510, %v1512
  %v1515 = vmax.f32 %v1511, %v1513
  %v1516 = vmax.f32 %v1514, %v1515
  %v1517 = vadd.f32 %v1516, %v1505
  %v1518 = vmax.f32 %v1517, 0.0
  %v1519 = vpack.c.bf16 %v1518, %v1518
  %1520 = vst [vmem:[#allocation5 + $0x4] sm:$0xf] %v1519
  %v1521 = vld [vmem:[#allocation4 + $0x40] sm:$0xff]
  %v1522 = vld [vmem:[#allocation4 + $0x48] sm:$0xff]
  %v1523 = vld [vmem:[#allocation4 + $0x50] sm:$0xff]
  %v1524 = vld [vmem:[#allocation4 + $0x58] sm:$0xff]
  %v1525 = vmax.f32 %v1521, %v1523
  %v1526 = vmax.f32 %v1522, %v1524
  %v1527 = vmax.f32 %v1525, %v1526
  %v1528 = vadd.f32 %v1527, %v1505
  %v1529 = vmax.f32 %v1528, 0.0
  %v1530 = vpack.c.bf16 %v1529, %v1529
  %1531 = vst [vmem:[#allocation5 + $0x8] sm:$0xf] %v1530
  %v1532 = vld [vmem:[#allocation4 + $0x60] sm:$0xff]
  %v1533 = vld [vmem:[#allocation4 + $0x68] sm:$0xff]
  %v1534 = vld [vmem:[#allocation4 + $0x70] sm:$0xff]
  %v1535 = vld [vmem:[#allocation4 + $0x78] sm:$0xff]
  %v1536 = vmax.f32 %v1532, %v1534
  %v1537 = vmax.f32 %v1533, %v1535
  %v1538 = vmax.f32 %v1536, %v1537
  %v1539 = vadd.f32 %v1538, %v1505
  %v1540 = vmax.f32 %v1539, 0.0
  %v1541 = vpack.c.bf16 %v1540, %v1540
  %1542 = vst [vmem:[#allocation5 + $0xc] sm:$0xf] %v1541
  %v1543 = vld [vmem:[#allocation5] sm:$0xff]
  %v1544 = vld [vmem:[#allocation5 + $0x8] sm:$0xff]
  %v1545 = vld [vmem:[%s3] sm:$0xf]
  %v1546 = vld [vmem:[%s3 + $0x4] sm:$0xf]
  %v1547 = vld [vmem:[%s3 + $0x8] sm:$0xf]
  %v1548 = vld [vmem:[%s3 + $0xc] sm:$0xf]
  %v1549 = vld [vmem:[%s3 + $0x10] sm:$0xf]
  %v1550 = vld [vmem:[%s3 + $0x14] sm:$0xf]
  %v1551 = vld [vmem:[%s3 + $0x18] sm:$0xf]
  %v1552 = vld [vmem:[%s3 + $0x1c] sm:$0xf]
  %v1553 = vld [vmem:[%s3 + $0x20] sm:$0xf]
  %v1554 = vld [vmem:[%s3 + $0x24] sm:$0xf]
  %v1555 = vld [vmem:[%s3 + $0x28] sm:$0xf]
  %v1556 = vld [vmem:[%s3 + $0x2c] sm:$0xf]
  %v1557 = vld [vmem:[%s3 + $0x30] sm:$0xf]
  %v1558 = vld [vmem:[%s3 + $0x34] sm:$0xf]
  %v1559 = vld [vmem:[%s3 + $0x38] sm:$0xf]
  %v1560 = vld [vmem:[%s3 + $0x3c] sm:$0xf]
  %v1561 = vld [vmem:[%s3 + $0x40] sm:$0xf]
  %v1562 = vld [vmem:[%s3 + $0x44] sm:$0xf]
  %v1563 = vld [vmem:[%s3 + $0x48] sm:$0xf]
  %v1564 = vld [vmem:[%s3 + $0x4c] sm:$0xf]
  %v1565 = vld [vmem:[%s3 + $0x50] sm:$0xf]
  %v1566 = vld [vmem:[%s3 + $0x54] sm:$0xf]
  %v1567 = vld [vmem:[%s3 + $0x58] sm:$0xf]
  %v1568 = vld [vmem:[%s3 + $0x5c] sm:$0xf]
  %v1569 = vld [vmem:[%s3 + $0x60] sm:$0xf]
  %v1570 = vld [vmem:[%s3 + $0x64] sm:$0xf]
  %v1571 = vld [vmem:[%s3 + $0x68] sm:$0xf]
  %v1572 = vld [vmem:[%s3 + $0x6c] sm:$0xf]
  %v1573 = vld [vmem:[%s3 + $0x70] sm:$0xf]
  %v1574 = vld [vmem:[%s3 + $0x74] sm:$0xf]
  %v1575 = vld [vmem:[%s3 + $0x78] sm:$0xf]
  %v1576 = vld [vmem:[%s3 + $0x7c] sm:$0xf]
  %v1577 = vld [vmem:[%s3 + $0x80] sm:$0xf]
  %v1578 = vld [vmem:[%s3 + $0x84] sm:$0xf]
  %v1579 = vld [vmem:[%s3 + $0x88] sm:$0xf]
  %v1580 = vld [vmem:[%s3 + $0x8c] sm:$0xf]
  %v1581 = vld [vmem:[%s3 + $0x90] sm:$0xf]
  %v1582 = vld [vmem:[%s3 + $0x94] sm:$0xf]
  %v1583 = vld [vmem:[%s3 + $0x98] sm:$0xf]
  %v1584 = vld [vmem:[%s3 + $0x9c] sm:$0xf]
  %v1585 = vld [vmem:[%s3 + $0xa0] sm:$0xf]
  %v1586 = vld [vmem:[%s3 + $0xa4] sm:$0xf]
  %v1587 = vld [vmem:[%s3 + $0xa8] sm:$0xf]
  %v1588 = vld [vmem:[%s3 + $0xac] sm:$0xf]
  %v1589 = vld [vmem:[%s3 + $0xb0] sm:$0xf]
  %v1590 = vld [vmem:[%s3 + $0xb4] sm:$0xf]
  %v1591 = vld [vmem:[%s3 + $0xb8] sm:$0xf]
  %v1592 = vld [vmem:[%s3 + $0xbc] sm:$0xf]
  %v1593 = vld [vmem:[%s3 + $0xc0] sm:$0xf]
  %v1594 = vld [vmem:[%s3 + $0xc4] sm:$0xf]
  %v1595 = vld [vmem:[%s3 + $0xc8] sm:$0xf]
  %v1596 = vld [vmem:[%s3 + $0xcc] sm:$0xf]
  %v1597 = vld [vmem:[%s3 + $0xd0] sm:$0xf]
  %v1598 = vld [vmem:[%s3 + $0xd4] sm:$0xf]
  %v1599 = vld [vmem:[%s3 + $0xd8] sm:$0xf]
  %v1600 = vld [vmem:[%s3 + $0xdc] sm:$0xf]
  %v1601 = vld [vmem:[%s3 + $0xe0] sm:$0xf]
  %v1602 = vld [vmem:[%s3 + $0xe4] sm:$0xf]
  %v1603 = vld [vmem:[%s3 + $0xe8] sm:$0xf]
  %v1604 = vld [vmem:[%s3 + $0xec] sm:$0xf]
  %v1605 = vld [vmem:[%s3 + $0xf0] sm:$0xf]
  %v1606 = vld [vmem:[%s3 + $0xf4] sm:$0xf]
  %v1607 = vld [vmem:[%s3 + $0xf8] sm:$0xf]
  %v1608 = vld [vmem:[%s3 + $0xfc] sm:$0xf]
  %v1609 = vld [vmem:[%s5 + $0x2] sm:$0x1]
  %v1610 = vlaneseq
  %v1611 = vshrl.u32 %v1610, 7
  %v1612 = vsub.s32 0, %v1611
  %v1613 = vrot.slane %v1609, %v1612
  %v1616 = vunpack.c.l.b16 %v1543
  %v1617 = vunpack.c.h.b16 %v1543
  %v1618 = vunpack.c.l.b16 %v1544
  %v1619 = vunpack.c.h.b16 %v1544
  %v1620 = vpack.c.b16 %v1616, %v1616
  %v1621 = vpack.c.b16 %v1617, %v1617
  %v1622 = vpack.c.b16 %v1618, %v1618
  %v1623 = vpack.c.b16 %v1619, %v1619
  %v1692 = vunpack.c.l.b16 %v1545
  %v1693 = vunpack.c.l.b16 %v1546
  %v1694 = vunpack.c.l.b16 %v1547
  %v1695 = vunpack.c.l.b16 %v1548
  %v1696 = vunpack.c.l.b16 %v1549
  %v1697 = vunpack.c.l.b16 %v1550
  %v1698 = vunpack.c.l.b16 %v1551
  %v1699 = vunpack.c.l.b16 %v1552
  %v1700 = vunpack.c.l.b16 %v1553
  %v1701 = vunpack.c.l.b16 %v1554
  %v1702 = vunpack.c.l.b16 %v1555
  %v1703 = vunpack.c.l.b16 %v1556
  %v1704 = vunpack.c.l.b16 %v1557
  %v1705 = vunpack.c.l.b16 %v1558
  %v1706 = vunpack.c.l.b16 %v1559
  %v1707 = vunpack.c.l.b16 %v1560
  %v1708 = vunpack.c.l.b16 %v1561
  %v1709 = vunpack.c.l.b16 %v1562
  %v1710 = vunpack.c.l.b16 %v1563
  %v1711 = vunpack.c.l.b16 %v1564
  %v1712 = vunpack.c.l.b16 %v1565
  %v1713 = vunpack.c.l.b16 %v1566
  %v1714 = vunpack.c.l.b16 %v1567
  %v1715 = vunpack.c.l.b16 %v1568
  %v1716 = vunpack.c.l.b16 %v1569
  %v1717 = vunpack.c.l.b16 %v1570
  %v1718 = vunpack.c.l.b16 %v1571
  %v1719 = vunpack.c.l.b16 %v1572
  %v1720 = vunpack.c.l.b16 %v1573
  %v1721 = vunpack.c.l.b16 %v1574
  %v1722 = vunpack.c.l.b16 %v1575
  %v1723 = vunpack.c.l.b16 %v1576
  %v1724 = vunpack.c.l.b16 %v1577
  %v1725 = vunpack.c.l.b16 %v1578
  %v1726 = vunpack.c.l.b16 %v1579
  %v1727 = vunpack.c.l.b16 %v1580
  %v1728 = vunpack.c.l.b16 %v1581
  %v1729 = vunpack.c.l.b16 %v1582
  %v1730 = vunpack.c.l.b16 %v1583
  %v1731 = vunpack.c.l.b16 %v1584
  %v1732 = vunpack.c.l.b16 %v1585
  %v1733 = vunpack.c.l.b16 %v1586
  %v1734 = vunpack.c.l.b16 %v1587
  %v1735 = vunpack.c.l.b16 %v1588
  %v1736 = vunpack.c.l.b16 %v1589
  %v1737 = vunpack.c.l.b16 %v1590
  %v1738 = vunpack.c.l.b16 %v1591
  %v1739 = vunpack.c.l.b16 %v1592
  %v1740 = vunpack.c.l.b16 %v1593
  %v1741 = vunpack.c.l.b16 %v1594
  %v1742 = vunpack.c.l.b16 %v1595
  %v1743 = vunpack.c.l.b16 %v1596
  %v1744 = vunpack.c.l.b16 %v1597
  %v1745 = vunpack.c.l.b16 %v1598
  %v1746 = vunpack.c.l.b16 %v1599
  %v1747 = vunpack.c.l.b16 %v1600
  %v1748 = vunpack.c.l.b16 %v1601
  %v1749 = vunpack.c.l.b16 %v1602
  %v1750 = vunpack.c.l.b16 %v1603
  %v1751 = vunpack.c.l.b16 %v1604
  %v1752 = vunpack.c.l.b16 %v1605
  %v1753 = vunpack.c.l.b16 %v1606
  %v1754 = vunpack.c.l.b16 %v1607
  %v1755 = vunpack.c.l.b16 %v1608
  %v1756 = vpack.c.b16 %v1693, %v1692
  %v1757 = vpack.c.b16 %v1695, %v1694
  %v1758 = vpack.c.b16 %v1697, %v1696
  %v1759 = vpack.c.b16 %v1699, %v1698
  %v1760 = vpack.c.b16 %v1701, %v1700
  %v1761 = vpack.c.b16 %v1703, %v1702
  %v1762 = vpack.c.b16 %v1705, %v1704
  %v1763 = vpack.c.b16 %v1707, %v1706
  %v1764 = vpack.c.b16 %v1709, %v1708
  %v1765 = vpack.c.b16 %v1711, %v1710
  %v1766 = vpack.c.b16 %v1713, %v1712
  %v1767 = vpack.c.b16 %v1715, %v1714
  %v1768 = vpack.c.b16 %v1717, %v1716
  %v1769 = vpack.c.b16 %v1719, %v1718
  %v1770 = vpack.c.b16 %v1721, %v1720
  %v1771 = vpack.c.b16 %v1723, %v1722
  %v1772 = vpack.c.b16 %v1725, %v1724
  %v1773 = vpack.c.b16 %v1727, %v1726
  %v1774 = vpack.c.b16 %v1729, %v1728
  %v1775 = vpack.c.b16 %v1731, %v1730
  %v1776 = vpack.c.b16 %v1733, %v1732
  %v1777 = vpack.c.b16 %v1735, %v1734
  %v1778 = vpack.c.b16 %v1737, %v1736
  %v1779 = vpack.c.b16 %v1739, %v1738
  %v1780 = vpack.c.b16 %v1741, %v1740
  %v1781 = vpack.c.b16 %v1743, %v1742
  %v1782 = vpack.c.b16 %v1745, %v1744
  %v1783 = vpack.c.b16 %v1747, %v1746
  %v1784 = vpack.c.b16 %v1749, %v1748
  %v1785 = vpack.c.b16 %v1751, %v1750
  %v1786 = vpack.c.b16 %v1753, %v1752
  %v1787 = vpack.c.b16 %v1755, %v1754
  %1820 = vmatprep.subr.bf16.mxu0 0
  %1821 = vmatpush1.bf16.msra.mxu0 %v1756
  %1822 = vmatprep.subr.bf16.mxu0 0
  %1823 = vmatpush1.bf16.msra.mxu0 %v1757
  %1824 = vmatprep.subr.bf16.mxu0 0
  %1825 = vmatpush1.bf16.msra.mxu0 %v1758
  %1826 = vmatprep.subr.bf16.mxu0 0
  %1827 = vmatpush1.bf16.msra.mxu0 %v1759
  %1828 = vmatprep.subr.bf16.mxu0 0
  %1829 = vmatpush1.bf16.msra.mxu0 %v1760
  %1830 = vmatprep.subr.bf16.mxu0 0
  %1831 = vmatpush1.bf16.msra.mxu0 %v1761
  %1832 = vmatprep.subr.bf16.mxu0 0
  %1833 = vmatpush1.bf16.msra.mxu0 %v1762
  %1834 = vmatprep.subr.bf16.mxu0 0
  %1835 = vmatpush1.bf16.msra.mxu0 %v1763
  %1836 = vmatprep.subr.bf16.mxu0 0
  %1837 = vmatpush1.bf16.msra.mxu0 %v1764
  %1838 = vmatprep.subr.bf16.mxu0 0
  %1839 = vmatpush1.bf16.msra.mxu0 %v1765
  %1840 = vmatprep.subr.bf16.mxu0 0
  %1841 = vmatpush1.bf16.msra.mxu0 %v1766
  %1842 = vmatprep.subr.bf16.mxu0 0
  %1843 = vmatpush1.bf16.msra.mxu0 %v1767
  %1844 = vmatprep.subr.bf16.mxu0 0
  %1845 = vmatpush1.bf16.msra.mxu0 %v1768
  %1846 = vmatprep.subr.bf16.mxu0 0
  %1847 = vmatpush1.bf16.msra.mxu0 %v1769
  %1848 = vmatprep.subr.bf16.mxu0 0
  %1849 = vmatpush1.bf16.msra.mxu0 %v1770
  %1850 = vmatprep.subr.bf16.mxu0 0
  %1851 = vmatpush1.bf16.msra.mxu0 %v1771
  %1852 = vmatprep.mubr.bf16.mxu0 %v1621
  %1853 = vmatmul.mubr.bf16.gmra.mrb[0].mxu0 %v1620
  %v1854 = vpop.f32.mrb[0].mxu0
  %v1855 = vadd.f32 %v1613, %v1854
  %v1856 = vpop.f32.mrb[0].mxu0
  %v1857 = vpop.f32.mrb[0].mxu0
  %v1858 = vpop.f32.mrb[0].mxu0
  %1859 = vdwg.mxu0
  %1860 = vmatprep.subr.bf16.mxu0 0
  %1861 = vmatpush1.bf16.msra.mxu0 %v1772
  %1862 = vmatprep.subr.bf16.mxu0 0
  %1863 = vmatpush1.bf16.msra.mxu0 %v1773
  %1864 = vmatprep.subr.bf16.mxu0 0
  %1865 = vmatpush1.bf16.msra.mxu0 %v1774
  %1866 = vmatprep.subr.bf16.mxu0 0
  %1867 = vmatpush1.bf16.msra.mxu0 %v1775
  %1868 = vmatprep.subr.bf16.mxu0 0
  %1869 = vmatpush1.bf16.msra.mxu0 %v1776
  %1870 = vmatprep.subr.bf16.mxu0 0
  %1871 = vmatpush1.bf16.msra.mxu0 %v1777
  %1872 = vmatprep.subr.bf16.mxu0 0
  %1873 = vmatpush1.bf16.msra.mxu0 %v1778
  %1874 = vmatprep.subr.bf16.mxu0 0
  %1875 = vmatpush1.bf16.msra.mxu0 %v1779
  %1876 = vmatprep.subr.bf16.mxu0 0
  %1877 = vmatpush1.bf16.msra.mxu0 %v1780
  %1878 = vmatprep.subr.bf16.mxu0 0
  %1879 = vmatpush1.bf16.msra.mxu0 %v1781
  %1880 = vmatprep.subr.bf16.mxu0 0
  %1881 = vmatpush1.bf16.msra.mxu0 %v1782
  %1882 = vmatprep.subr.bf16.mxu0 0
  %1883 = vmatpush1.bf16.msra.mxu0 %v1783
  %1884 = vmatprep.subr.bf16.mxu0 0
  %1885 = vmatpush1.bf16.msra.mxu0 %v1784
  %1886 = vmatprep.subr.bf16.mxu0 0
  %1887 = vmatpush1.bf16.msra.mxu0 %v1785
  %1888 = vmatprep.subr.bf16.mxu0 0
  %1889 = vmatpush1.bf16.msra.mxu0 %v1786
  %1890 = vmatprep.subr.bf16.mxu0 0
  %1891 = vmatpush1.bf16.msra.mxu0 %v1787
  %1892 = vmatprep.mubr.bf16.mxu0 %v1623
  %1893 = vmatmul.mubr.bf16.gmra.mrb[0].mxu0 %v1622
  %v1894 = vpop.f32.mrb[0].mxu0
  %v1895 = vadd.f32 %v1855, %v1894
  %v1896 = vpop.f32.mrb[0].mxu0
  %v1897 = vpop.f32.mrb[0].mxu0
  %v1898 = vpop.f32.mrb[0].mxu0
  %1899 = vdwg.mxu0
  %v1900 = vmax.f32 %v1895, 0.0
  %v1901 = vpack.c.bf16 %v1900, %v1900
  %v1902 = vld [vmem:[%s4] sm:$0xf]
  %v1903 = vld [vmem:[%s4 + $0x4] sm:$0xf]
  %v1904 = vld [vmem:[%s4 + $0x8] sm:$0xf]
  %v1905 = vld [vmem:[%s4 + $0xc] sm:$0xf]
  %v1906 = vld [vmem:[%s4 + $0x10] sm:$0xf]
  %v1907 = vld [vmem:[%s4 + $0x14] sm:$0xf]
  %v1908 = vld [vmem:[%s4 + $0x18] sm:$0xf]
  %v1909 = vld [vmem:[%s4 + $0x1c] sm:$0xf]
  %v1910 = vld [vmem:[%s4 + $0x20] sm:$0xf]
  %v1911 = vld [vmem:[%s4 + $0x24] sm:$0xf]
  %v1912 = vld [vmem:[%s4 + $0x28] sm:$0xf]
  %v1913 = vld [vmem:[%s4 + $0x2c] sm:$0xf]
  %v1914 = vld [vmem:[%s4 + $0x30] sm:$0xf]
  %v1915 = vld [vmem:[%s4 + $0x34] sm:$0xf]
  %v1916 = vld [vmem:[%s4 + $0x38] sm:$0xf]
  %v1917 = vld [vmem:[%s4 + $0x3c] sm:$0xf]
  %v1918 = vld [vmem:[%s5 + $0x3] sm:$0x1]
  %v1919 = vlaneseq
  %v1920 = vshrl.u32 %v1919, 7
  %v1921 = vsub.s32 0, %v1920
  %v1922 = vrot.slane %v1918, %v1921
  %v1939 = vunpack.c.l.b16 %v1902
  %v1940 = vunpack.c.l.b16 %v1903
  %v1941 = vunpack.c.l.b16 %v1904
  %v1942 = vunpack.c.l.b16 %v1905
  %v1943 = vunpack.c.l.b16 %v1906
  %v1944 = vunpack.c.l.b16 %v1907
  %v1945 = vunpack.c.l.b16 %v1908
  %v1946 = vunpack.c.l.b16 %v1909
  %v1947 = vunpack.c.l.b16 %v1910
  %v1948 = vunpack.c.l.b16 %v1911
  %v1949 = vunpack.c.l.b16 %v1912
  %v1950 = vunpack.c.l.b16 %v1913
  %v1951 = vunpack.c.l.b16 %v1914
  %v1952 = vunpack.c.l.b16 %v1915
  %v1953 = vunpack.c.l.b16 %v1916
  %v1954 = vunpack.c.l.b16 %v1917
  %v1955 = vpack.c.b16 %v1940, %v1939
  %v1956 = vpack.c.b16 %v1942, %v1941
  %v1957 = vpack.c.b16 %v1944, %v1943
  %v1958 = vpack.c.b16 %v1946, %v1945
  %v1959 = vpack.c.b16 %v1948, %v1947
  %v1960 = vpack.c.b16 %v1950, %v1949
  %v1961 = vpack.c.b16 %v1952, %v1951
  %v1962 = vpack.c.b16 %v1954, %v1953
  %1971 = vmatprep.subr.bf16.mxu0 0
  %1972 = vmatpush1.bf16.msra.mxu0 %v1955
  %1973 = vmatprep.subr.bf16.mxu0 0
  %1974 = vmatpush1.bf16.msra.mxu0 %v1956
  %1975 = vmatprep.subr.bf16.mxu0 0
  %1976 = vmatpush1.bf16.msra.mxu0 %v1957
  %1977 = vmatprep.subr.bf16.mxu0 0
  %1978 = vmatpush1.bf16.msra.mxu0 %v1958
  %1979 = vmatprep.subr.bf16.mxu0 0
  %1980 = vmatpush1.bf16.msra.mxu0 %v1959
  %1981 = vmatprep.subr.bf16.mxu0 0
  %1982 = vmatpush1.bf16.msra.mxu0 %v1960
  %1983 = vmatprep.subr.bf16.mxu0 0
  %1984 = vmatpush1.bf16.msra.mxu0 %v1961
  %1985 = vmatprep.subr.bf16.mxu0 0
  %1986 = vmatpush1.bf16.msra.mxu0 %v1962
  %1987 = vmatprep.subr.bf16.mxu0 0
  %1988 = vmatpush1.bf16.msra.mxu0 0
  %1989 = vmatprep.subr.bf16.mxu0 0
  %1990 = vmatpush1.bf16.msra.mxu0 0
  %1991 = vmatprep.subr.bf16.mxu0 0
  %1992 = vmatpush1.bf16.msra.mxu0 0
  %1993 = vmatprep.subr.bf16.mxu0 0
  %1994 = vmatpush1.bf16.msra.mxu0 0
  %1995 = vmatprep.subr.bf16.mxu0 0
  %1996 = vmatpush1.bf16.msra.mxu0 0
  %1997 = vmatprep.subr.bf16.mxu0 0
  %1998 = vmatpush1.bf16.msra.mxu0 0
  %1999 = vmatprep.subr.bf16.mxu0 0
  %2000 = vmatpush1.bf16.msra.mxu0 0
  %2001 = vmatprep.subr.bf16.mxu0 0
  %2002 = vmatpush1.bf16.msra.mxu0 0
  %2003 = vmatprep.mubr.bf16.mxu0 0
  %2004 = vmatmul.mubr.bf16.gmra.mrb[0].mxu0 %v1901
  %v2005 = vpop.f32.mrb[0].mxu0
  %v2006 = vadd.f32 %v1922, %v2005
  %v2007 = vpop.f32.mrb[0].mxu0
  %v2008 = vpop.f32.mrb[0].mxu0
  %v2009 = vpop.f32.mrb[0].mxu0
  %2010 = vdwg.mxu0
  %v2011 = vlaneseq
  %v2012 = vand.u32 %v2011, 127
  %vm2013 = vcmp.lt.s32.totalorder %v2012, 10
  %v2014 = vsel %vm2013, %v2006, -1e+30
  %2015 = vmax.xlane.f32.xlu0 %v2014
  %v2016 = vpop.xlane.xlu0 %2015
  %v2017 = vsub.f32 %v2014, %v2016
  %v2018 = vmul.f32 %v2017, 1.442695
  %v2019 = vpow.pop %v2018
  %v2020 = vsel %vm2013, %v2019, 0.0
  %2021 = vadd.xlane.f32.xlu0 %v2020
  %v2022 = vpop.xlane.xlu0 %2021
  %v2023 = vrcp.pop %v2022
  %v2024 = vmul.f32 %v2020, %v2023
  %2025 = vst [vmem:[%s6] sm:$0xff] %v2024
  // Predicated region
  $region26: #{hao_forward.1} parent=0 // pred_check
    _
  $region27: #{hao_forward.1} parent=0 // pred_check_branch
    %2027 = sbr.rel (0) target = $region29
  $region28: #{hao_forward.1} parent=0 // pred_region
    _
  $region29: #{hao_forward.1} parent=0 // pred_fallthru
    _
  // Predicated region
  $region30: #{hao_forward.1} parent=0 // pred_check
    _
  $region31: #{hao_forward.1} parent=0 // pred_check_branch
    %2029 = sbr.rel (0) target = $region33
  $region32: #{hao_forward.1} parent=0 // pred_region
    _
  $region33: #{hao_forward.1} parent=0 // pred_fallthru
    _

</llo_original>
